<compile_context>
chip_gen: v5e
topology: v5e:2x2
jax: 0.10.0
libtpu: 0.0.40
codegen_flags: <defaults>
</compile_context>

<pallas_src>
import functools

import numpy as np

import jax
import jax.numpy as jnp
from jax.experimental import pallas as pl
from jax.experimental.pallas import tpu as pltpu

EPS = 1e-5


# ------------------------------ fused kernel --------------------------------

def _bottleneck_fused_kernel(x_ref, w1_ref, b1_ref, w2_ref, b2_ref,
                             w3_ref, b3_ref, mask_ref, o_ref,
                             y1p_ref, col_ref, *, tT, H, W, P):
    """One grid step = one batch element x one tile of tT frames.

    x_ref  : (1, Cin, tT*L)   channel-first, L = H*W (also the residual)
    w1_ref : (P, Cin)    b1_ref : (P, 1)   f32
    w2_ref : (P, 9P)     b2_ref : (P, 1)   (im2col column order (kh, kw, cin))
    w3_ref : (4P, P)     b3_ref : (4P, 1)
    mask_ref: (3, L)     horizontal-wrap masks for kw = 0, 1, 2
    o_ref  : (1, 4P, tT*L)
    y1p_ref: (P, tT*(L + 2*(W+1)))  per-frame zero-halo flat stage-1 buffer
    col_ref: (9P, tT*L)             im2col matrix for the (1,3,3) conv
    """
    L = H * W
    pad = W + 1                      # flat halo wide enough for any 3x3 tap
    Lpp = L + 2 * pad
    cdtype = col_ref.dtype           # matmul / scratch compute dtype

    # Zero ONLY the halo columns; the interior is overwritten every step.
    zhalo = jnp.zeros((y1p_ref.shape[0], pad), dtype=cdtype)
    for f in range(tT):
        y1p_ref[:, f * Lpp:f * Lpp + pad] = zhalo
        y1p_ref[:, f * Lpp + pad + L:(f + 1) * Lpp] = zhalo

    # Hoist weight / bias / mask loads and broadcasts out of the tap loops
    # (JAX does not CSE broadcast_in_dim).
    w1 = w1_ref[...]
    b1 = b1_ref[...]
    w2 = w2_ref[...]
    b2 = b2_ref[...]
    w3 = w3_ref[...]
    b3 = b3_ref[...]
    mask_l = jnp.broadcast_to(mask_ref[0:1, :], (P, L))   # valid where w-1 >= 0
    mask_r = jnp.broadcast_to(mask_ref[2:3, :], (P, L))   # valid where w+1 <= W-1

    xf = x_ref[0]                      # (Cin, tT*L) f32, reused as the residual
    x_mm = xf.astype(cdtype)

    # ---- stage 1: 1x1x1 conv + BN + relu  (ONE matmul over all tT frames) ----
    y1 = jnp.dot(w1, x_mm, preferred_element_type=jnp.float32)
    y1 = jnp.maximum(y1 + b1, 0.0).astype(cdtype)          # (P, tT*L)

    # Scatter stage-1 output into the per-frame zero-halo buffer.
    for f in range(tT):
        y1p_ref[:, f * Lpp + pad:f * Lpp + pad + L] = y1[:, f * L:(f + 1) * L]

    # ---- stage 2: (1,3,3) conv + BN + relu as ONE K=9P matmul over all frames ----
    # Each tap is a shifted slice of the flat zero-padded buffer; vertical
    # overflow lands in the zero halo, horizontal wrap is masked out.
    for f in range(tT):
        base = f * Lpp + pad
        for kh in range(3):
            for kw in range(3):
                idx = kh * 3 + kw
                d = (kh - 1) * W + (kw - 1)                # flat spatial shift
                sl = y1p_ref[:, base + d:base + d + L]     # (P, L)
                if kw == 0:
                    sl = sl * mask_l
                elif kw == 2:
                    sl = sl * mask_r
                col_ref[idx * P:(idx + 1) * P, f * L:(f + 1) * L] = sl
    y2 = jnp.dot(w2, col_ref[...], preferred_element_type=jnp.float32)
    y2 = jnp.maximum(y2 + b2, 0.0).astype(cdtype)          # (P, tT*L)

    # ---- stage 3: 1x1x1 conv + BN + residual + relu (ONE lane-dense store) ----
    y3 = jnp.dot(w3, y2, preferred_element_type=jnp.float32)
    y3 = jnp.maximum(y3 + b3 + xf.astype(jnp.float32), 0.0)
    o_ref[0] = y3.astype(o_ref.dtype)


# ------------------------------- glue helpers -------------------------------

def _fold_bn(w, gamma, beta, mean, var):
    # w: (Cout, Cin, kT, kH, kW) PyTorch layout; conv has no bias.
    scale = gamma / jnp.sqrt(var + EPS)
    w_f = w * scale[:, None, None, None, None]
    b_f = beta - mean * scale
    return w_f, b_f


def _pick_tile_t(T, L, Cin, Cout, P, W, *, cbytes, io_bytes, t_cap=4,
                 budget_bytes=40 * 1024 * 1024):
    """Largest tT <= t_cap dividing T whose pipelined footprint fits the budget
    and whose block lane dim is (8,128)-legal (tT*L % 128 == 0 or tT == T)."""
    Lpp = L + 2 * (W + 1)

    def footprint(tT):
        io = 2 * (Cin + Cout) * tT * L * io_bytes              # double-buffered x+out
        scratch = (P * tT * Lpp + 9 * P * tT * L) * cbytes     # y1p + im2col
        weights = (P * Cin + 9 * P * P + Cout * P + 3 * L) * cbytes + (2 * P + Cout) * 4
        return io + scratch + 2 * weights

    candidates = [t for t in range(min(T, t_cap), 0, -1)
                  if T % t == 0 and ((t * L) % 128 == 0 or t == T)]
    for t in candidates:
        if footprint(t) <= budget_bytes:
            return t
    if candidates:
        return candidates[-1]      # smallest lane-legal divisor
    # TODO(synk): no lane-friendly divisor of T <= t_cap; fall back to whole T.
    return T


# ------------------------------ forward pass --------------------------------

def bottleneck_forward(x, params, *, compute_dtype=jnp.bfloat16, t_cap=4,
                       vmem_limit_bytes=64 * 1024 * 1024):
    """x: (N, C, T, H, W) float32, NCDHW like the PyTorch module (eval-mode BN)."""
    N, Cin, T, H, W = x.shape
    P = params["conv1_w"].shape[0]           # planes
    Cout = 4 * P
    assert Cin == Cout, "downsample=None requires inplanes == planes * 4"

    L = H * W
    pad = W + 1
    Lpp = L + 2 * pad
    cbytes = jnp.dtype(compute_dtype).itemsize

    tT = _pick_tile_t(T, L, Cin, Cout, P, W, cbytes=cbytes,
                      io_bytes=x.dtype.itemsize, t_cap=t_cap)
    nT = T // tT

    # Fold eval-mode BN into channel-first matmul weights / per-channel f32 bias.
    w1, b1 = _fold_bn(params["conv1_w"], params["bn1_g"], params["bn1_b"],
                      params["bn1_m"], params["bn1_v"])
    w2, b2 = _fold_bn(params["conv2_w"], params["bn2_g"], params["bn2_b"],
                      params["bn2_m"], params["bn2_v"])
    w3, b3 = _fold_bn(params["conv3_w"], params["bn3_g"], params["bn3_b"],
                      params["bn3_m"], params["bn3_v"])
    w1_m = w1[:, :, 0, 0, 0].astype(compute_dtype)                     # (P, Cin)
    # im2col column order (kh, kw, cin) -> (P, 9P)
    w2_m = jnp.transpose(w2[:, :, 0, :, :], (0, 2, 3, 1)).reshape(P, 9 * P)
    w2_m = w2_m.astype(compute_dtype)
    w3_m = w3[:, :, 0, 0, 0].astype(compute_dtype)                     # (4P, P)
    b1 = b1.astype(jnp.float32)[:, None]
    b2 = b2.astype(jnp.float32)[:, None]
    b3 = b3.astype(jnp.float32)[:, None]

    # Horizontal-wrap masks for the flat im2col slices (static constants).
    wpos = np.arange(L) % W
    masks_np = np.stack([(wpos >= 1),               # kw = 0  (dw = -1)
                         np.ones(L, dtype=bool),    # kw = 1  (dw =  0)
                         (wpos <= W - 2)]           # kw = 2  (dw = +1)
                        ).astype(np.float32)
    masks = jnp.asarray(masks_np, dtype=compute_dtype)                 # (3, L)

    x3 = x.reshape(N, Cin, T * L)        # free reshape: no transpose, no pad

    flops = 2 * N * T * L * (P * Cin + 9 * P * P + 4 * P * P)
    bytes_accessed = (N * T * L * (Cin + Cout)) * x.dtype.itemsize \
        + (P * Cin + 9 * P * P + Cout * P + 3 * L) * cbytes + (2 * P + Cout) * 4
    cost = pl.CostEstimate(flops=flops, transcendentals=0,
                           bytes_accessed=bytes_accessed)

    kernel = functools.partial(_bottleneck_fused_kernel, tT=tT, H=H, W=W, P=P)
    out3 = pl.pallas_call(
        kernel,
        out_shape=jax.ShapeDtypeStruct((N, Cout, T * L), x.dtype),
        grid=(N, nT),
        in_specs=[
            pl.BlockSpec((1, Cin, tT * L), lambda n, t: (n, 0, t)),    # x / residual
            pl.BlockSpec((P, Cin),         lambda n, t: (0, 0)),       # w1
            pl.BlockSpec((P, 1),           lambda n, t: (0, 0)),       # b1
            pl.BlockSpec((P, 9 * P),       lambda n, t: (0, 0)),       # w2 (im2col)
            pl.BlockSpec((P, 1),           lambda n, t: (0, 0)),       # b2
            pl.BlockSpec((Cout, P),        lambda n, t: (0, 0)),       # w3
            pl.BlockSpec((Cout, 1),        lambda n, t: (0, 0)),       # b3
            pl.BlockSpec((3, L),           lambda n, t: (0, 0)),       # wrap masks
        ],
        out_specs=pl.BlockSpec((1, Cout, tT * L), lambda n, t: (n, 0, t)),
        scratch_shapes=[pltpu.VMEM((P, tT * Lpp), compute_dtype),      # y1 (zero halo)
                        pltpu.VMEM((9 * P, tT * L), compute_dtype)],   # im2col matrix
        compiler_params=pltpu.CompilerParams(
            dimension_semantics=("parallel", "parallel"),
            vmem_limit_bytes=int(vmem_limit_bytes)),
        cost_estimate=cost,
    )(x3, w1_m, b1, w2_m, b2, w3_m, b3, masks)

    return out3.reshape(N, Cout, T, H, W)


# ------------------------------ pure-JAX reference ---------------------------

def bottleneck_reference(x, params):
    def bn(y, g, b, m, v):
        sh = (1, -1, 1, 1, 1)
        return (y - m.reshape(sh)) / jnp.sqrt(v.reshape(sh) + EPS) * g.reshape(sh) + b.reshape(sh)

    dn = ("NCDHW", "OIDHW", "NCDHW")
    out = jax.lax.conv_general_dilated(x, params["conv1_w"], (1, 1, 1),
                                       ((0, 0), (0, 0), (0, 0)), dimension_numbers=dn)
    out = jax.nn.relu(bn(out, params["bn1_g"], params["bn1_b"], params["bn1_m"], params["bn1_v"]))
    out = jax.lax.conv_general_dilated(out, params["conv2_w"], (1, 1, 1),
                                       ((0, 0), (1, 1), (1, 1)), dimension_numbers=dn)
    out = jax.nn.relu(bn(out, params["bn2_g"], params["bn2_b"], params["bn2_m"], params["bn2_v"]))
    out = jax.lax.conv_general_dilated(out, params["conv3_w"], (1, 1, 1),
                                       ((0, 0), (0, 0), (0, 0)), dimension_numbers=dn)
    out = bn(out, params["bn3_g"], params["bn3_b"], params["bn3_m"], params["bn3_v"])
    return jax.nn.relu(out + x)


# --------------------------------- main --------------------------------------

def make_params(key, inplanes, planes):
    ks = jax.random.split(key, 6)
    f32 = jnp.float32
    p = {
        "conv1_w": 0.1 * jax.random.normal(ks[0], (planes, inplanes, 1, 1, 1), f32),
        "conv2_w": 0.1 * jax.random.normal(ks[1], (planes, planes, 1, 3, 3), f32),
        "conv3_w": 0.1 * jax.random.normal(ks[2], (planes * 4, planes, 1, 1, 1), f32),
    }
    for i, (name, c) in enumerate([("bn1", planes), ("bn2", planes), ("bn3", planes * 4)]):
        kg, kb, km, kv = jax.random.split(ks[3 + i], 4)
        p[f"{name}_g"] = 1.0 + 0.1 * jax.random.normal(kg, (c,), f32)
        p[f"{name}_b"] = 0.1 * jax.random.normal(kb, (c,), f32)
        p[f"{name}_m"] = 0.1 * jax.random.normal(km, (c,), f32)
        p[f"{name}_v"] = 0.5 + 0.2 * jnp.abs(jax.random.normal(kv, (c,), f32))
    return p


if __name__ == "__main__":
    key = jax.random.PRNGKey(0)
    k_params, k_x = jax.random.split(key)

    inplanes, planes = 16, 4           # inplanes == planes * 4 (no downsample)
    N, T, H, W = 2, 8, 8, 8            # T=8 exercises the (N, T-tiles) grid

    params = make_params(k_params, inplanes, planes)
    x = jax.random.normal(k_x, (N, inplanes, T, H, W), jnp.float32)

    ref = bottleneck_reference(x, params)

    # Exact f32 compute path (validates the fused math bit-for-bit-ish).
    out_f32 = jax.jit(functools.partial(bottleneck_forward,
                                        compute_dtype=jnp.float32))(x, params)
    out_f32 = jax.block_until_ready(out_f32)
    assert out_f32.shape == (N, planes * 4, T, H, W)
    err32 = float(jnp.max(jnp.abs(out_f32 - ref)))
    assert jnp.allclose(out_f32, ref, rtol=1e-4, atol=1e-4), f"f32 max err {err32}"

    # Default bf16-matmul fast path (f32 accumulate / residual), looser tolerance.
    out_bf16 = jax.jit(functools.partial(bottleneck_forward,
                                         compute_dtype=jnp.bfloat16))(x, params)
    out_bf16 = jax.block_until_ready(out_bf16)
    errbf = float(jnp.max(jnp.abs(out_bf16 - ref)))
    assert jnp.allclose(out_bf16, ref, rtol=5e-2, atol=5e-2), f"bf16 max err {errbf}"

    print("KERNEL_OK")
</pallas_src>

<mosaic_0001>
module attributes {stable_mosaic.version = 11 : i64} {
  func.func @_bottleneck_fused_kernel(%arg0: i32, %arg1: i32, %arg2: memref<1x16x256xf32, #tpu.memory_space<vmem>>, %arg3: memref<4x16xf32, #tpu.memory_space<vmem>>, %arg4: memref<4x1xf32, #tpu.memory_space<vmem>>, %arg5: memref<4x36xf32, #tpu.memory_space<vmem>>, %arg6: memref<4x1xf32, #tpu.memory_space<vmem>>, %arg7: memref<16x4xf32, #tpu.memory_space<vmem>>, %arg8: memref<16x1xf32, #tpu.memory_space<vmem>>, %arg9: memref<3x64xf32, #tpu.memory_space<vmem>>, %arg10: memref<1x16x256xf32, #tpu.memory_space<vmem>>, %arg11: memref<4x328xf32, #tpu.memory_space<vmem>>, %arg12: memref<36x256xf32, #tpu.memory_space<vmem>>) attributes {dimension_semantics = [#tpu.dimension_semantics<parallel>, #tpu.dimension_semantics<parallel>], iteration_bounds = array<i64: 2, 2>, scalar_prefetch = 0 : i64, scratch_operands = 2 : i64, tpu.core_type = #tpu.core_type<tc>, window_params = [{transform_indices = @transform_0, window_bounds = array<i64: 1, 16, 256>}, {pipeline_mode = #tpu.pipeline_mode<synchronous>, transform_indices = @transform_1, window_bounds = array<i64: 4, 16>}, {pipeline_mode = #tpu.pipeline_mode<synchronous>, transform_indices = @transform_2, window_bounds = array<i64: 4, 1>}, {pipeline_mode = #tpu.pipeline_mode<synchronous>, transform_indices = @transform_3, window_bounds = array<i64: 4, 36>}, {pipeline_mode = #tpu.pipeline_mode<synchronous>, transform_indices = @transform_4, window_bounds = array<i64: 4, 1>}, {pipeline_mode = #tpu.pipeline_mode<synchronous>, transform_indices = @transform_5, window_bounds = array<i64: 16, 4>}, {pipeline_mode = #tpu.pipeline_mode<synchronous>, transform_indices = @transform_6, window_bounds = array<i64: 16, 1>}, {pipeline_mode = #tpu.pipeline_mode<synchronous>, transform_indices = @transform_7, window_bounds = array<i64: 3, 64>}, {transform_indices = @transform_8, window_bounds = array<i64: 1, 16, 256>}]} {
    %cst = arith.constant 0.000000e+00 : f32
    %0 = vector.broadcast %cst : f32 to vector<4x9xf32>
    %c0 = arith.constant 0 : index
    %c0_0 = arith.constant 0 : index
    %1 = vector.load %arg11[%c0, %c0_0] : memref<4x328xf32, #tpu.memory_space<vmem>>, vector<4x9xf32>
    tpu.vector_store %arg11[%c0, %c0_0], %0 {strides = array<i32>} : memref<4x328xf32, #tpu.memory_space<vmem>>, vector<4x9xf32>,
    %c0_1 = arith.constant 0 : index
    %c73 = arith.constant 73 : index
    %2 = vector.load %arg11[%c0_1, %c73] : memref<4x328xf32, #tpu.memory_space<vmem>>, vector<4x9xf32>
    tpu.vector_store %arg11[%c0_1, %c73], %0 {strides = array<i32>} : memref<4x328xf32, #tpu.memory_space<vmem>>, vector<4x9xf32>,
    %c0_2 = arith.constant 0 : index
    %c82 = arith.constant 82 : index
    %3 = vector.load %arg11[%c0_2, %c82] : memref<4x328xf32, #tpu.memory_space<vmem>>, vector<4x9xf32>
    tpu.vector_store %arg11[%c0_2, %c82], %0 {strides = array<i32>} : memref<4x328xf32, #tpu.memory_space<vmem>>, vector<4x9xf32>,
    %c0_3 = arith.constant 0 : index
    %c155 = arith.constant 155 : index
    %4 = vector.load %arg11[%c0_3, %c155] : memref<4x328xf32, #tpu.memory_space<vmem>>, vector<4x9xf32>
    tpu.vector_store %arg11[%c0_3, %c155], %0 {strides = array<i32>} : memref<4x328xf32, #tpu.memory_space<vmem>>, vector<4x9xf32>,
    %c0_4 = arith.constant 0 : index
    %c164 = arith.constant 164 : index
    %5 = vector.load %arg11[%c0_4, %c164] : memref<4x328xf32, #tpu.memory_space<vmem>>, vector<4x9xf32>
    tpu.vector_store %arg11[%c0_4, %c164], %0 {strides = array<i32>} : memref<4x328xf32, #tpu.memory_space<vmem>>, vector<4x9xf32>,
    %c0_5 = arith.constant 0 : index
    %c237 = arith.constant 237 : index
    %6 = vector.load %arg11[%c0_5, %c237] : memref<4x328xf32, #tpu.memory_space<vmem>>, vector<4x9xf32>
    tpu.vector_store %arg11[%c0_5, %c237], %0 {strides = array<i32>} : memref<4x328xf32, #tpu.memory_space<vmem>>, vector<4x9xf32>,
    %c0_6 = arith.constant 0 : index
    %c246 = arith.constant 246 : index
    %7 = vector.load %arg11[%c0_6, %c246] : memref<4x328xf32, #tpu.memory_space<vmem>>, vector<4x9xf32>
    tpu.vector_store %arg11[%c0_6, %c246], %0 {strides = array<i32>} : memref<4x328xf32, #tpu.memory_space<vmem>>, vector<4x9xf32>,
    %c0_7 = arith.constant 0 : index
    %c319 = arith.constant 319 : index
    %8 = vector.load %arg11[%c0_7, %c319] : memref<4x328xf32, #tpu.memory_space<vmem>>, vector<4x9xf32>
    tpu.vector_store %arg11[%c0_7, %c319], %0 {strides = array<i32>} : memref<4x328xf32, #tpu.memory_space<vmem>>, vector<4x9xf32>,
    %c0_8 = arith.constant 0 : index
    %c0_9 = arith.constant 0 : index
    %9 = vector.load %arg3[%c0_8, %c0_9] : memref<4x16xf32, #tpu.memory_space<vmem>>, vector<4x16xf32>
    %c0_10 = arith.constant 0 : index
    %c0_11 = arith.constant 0 : index
    %10 = vector.load %arg4[%c0_10, %c0_11] : memref<4x1xf32, #tpu.memory_space<vmem>>, vector<4x1xf32>
    %c0_12 = arith.constant 0 : index
    %c0_13 = arith.constant 0 : index
    %11 = vector.load %arg5[%c0_12, %c0_13] : memref<4x36xf32, #tpu.memory_space<vmem>>, vector<4x36xf32>
    %c0_14 = arith.constant 0 : index
    %c0_15 = arith.constant 0 : index
    %12 = vector.load %arg6[%c0_14, %c0_15] : memref<4x1xf32, #tpu.memory_space<vmem>>, vector<4x1xf32>
    %c0_16 = arith.constant 0 : index
    %c0_17 = arith.constant 0 : index
    %13 = vector.load %arg7[%c0_16, %c0_17] : memref<16x4xf32, #tpu.memory_space<vmem>>, vector<16x4xf32>
    %c0_18 = arith.constant 0 : index
    %c0_19 = arith.constant 0 : index
    %14 = vector.load %arg8[%c0_18, %c0_19] : memref<16x1xf32, #tpu.memory_space<vmem>>, vector<16x1xf32>
    %c0_20 = arith.constant 0 : index
    %c0_21 = arith.constant 0 : index
    %15 = vector.load %arg9[%c0_20, %c0_21] : memref<3x64xf32, #tpu.memory_space<vmem>>, vector<1x64xf32>
    %16 = vector.shape_cast %15 : vector<1x64xf32> to vector<1x64xf32>
    %17 = vector.broadcast %16 : vector<1x64xf32> to vector<4x64xf32>
    %c2 = arith.constant 2 : index
    %c0_22 = arith.constant 0 : index
    %18 = vector.load %arg9[%c2, %c0_22] : memref<3x64xf32, #tpu.memory_space<vmem>>, vector<1x64xf32>
    %19 = vector.shape_cast %18 : vector<1x64xf32> to vector<1x64xf32>
    %20 = vector.broadcast %19 : vector<1x64xf32> to vector<4x64xf32>
    %c0_23 = arith.constant 0 : index
    %c0_24 = arith.constant 0 : index
    %c0_25 = arith.constant 0 : index
    %21 = vector.load %arg2[%c0_23, %c0_24, %c0_25] : memref<1x16x256xf32, #tpu.memory_space<vmem>>, vector<1x16x256xf32>
    %22 = vector.shape_cast %21 : vector<1x16x256xf32> to vector<16x256xf32>
    %cst_26 = arith.constant dense<0.000000e+00> : vector<4x256xf32>
    %23 = tpu.matmul %9, %22, %cst_26 {dimension_numbers = #tpu.dot_dimension_numbers<[1], [0], [0], [1], [0, 0, 1, 1], [], []>} : vector<4x16xf32>, vector<16x256xf32>, vector<4x256xf32> -> vector<4x256xf32>
    %24 = vector.broadcast %10 : vector<4x1xf32> to vector<4x256xf32>
    %25 = arith.addf %23, %24 : vector<4x256xf32>
    %cst_27 = arith.constant 0.000000e+00 : f32
    %26 = vector.broadcast %cst_27 : f32 to vector<4x256xf32>
    %27 = arith.maximumf %25, %26 : vector<4x256xf32>
    %28 = vector.extract_strided_slice %27 {offsets = [0, 0], sizes = [4, 64], strides = [1, 1]} : vector<4x256xf32> to vector<4x64xf32>
    %c0_28 = arith.constant 0 : index
    %c9 = arith.constant 9 : index
    %29 = vector.load %arg11[%c0_28, %c9] : memref<4x328xf32, #tpu.memory_space<vmem>>, vector<4x64xf32>
    tpu.vector_store %arg11[%c0_28, %c9], %28 {strides = array<i32>} : memref<4x328xf32, #tpu.memory_space<vmem>>, vector<4x64xf32>,
    %30 = vector.extract_strided_slice %27 {offsets = [0, 64], sizes = [4, 64], strides = [1, 1]} : vector<4x256xf32> to vector<4x64xf32>
    %c0_29 = arith.constant 0 : index
    %c91 = arith.constant 91 : index
    %31 = vector.load %arg11[%c0_29, %c91] : memref<4x328xf32, #tpu.memory_space<vmem>>, vector<4x64xf32>
    tpu.vector_store %arg11[%c0_29, %c91], %30 {strides = array<i32>} : memref<4x328xf32, #tpu.memory_space<vmem>>, vector<4x64xf32>,
    %32 = vector.extract_strided_slice %27 {offsets = [0, 128], sizes = [4, 64], strides = [1, 1]} : vector<4x256xf32> to vector<4x64xf32>
    %c0_30 = arith.constant 0 : index
    %c173 = arith.constant 173 : index
    %33 = vector.load %arg11[%c0_30, %c173] : memref<4x328xf32, #tpu.memory_space<vmem>>, vector<4x64xf32>
    tpu.vector_store %arg11[%c0_30, %c173], %32 {strides = array<i32>} : memref<4x328xf32, #tpu.memory_space<vmem>>, vector<4x64xf32>,
    %34 = vector.extract_strided_slice %27 {offsets = [0, 192], sizes = [4, 64], strides = [1, 1]} : vector<4x256xf32> to vector<4x64xf32>
    %c0_31 = arith.constant 0 : index
    %c255 = arith.constant 255 : index
    %35 = vector.load %arg11[%c0_31, %c255] : memref<4x328xf32, #tpu.memory_space<vmem>>, vector<4x64xf32>
    tpu.vector_store %arg11[%c0_31, %c255], %34 {strides = array<i32>} : memref<4x328xf32, #tpu.memory_space<vmem>>, vector<4x64xf32>,
    %c0_32 = arith.constant 0 : index
    %c0_33 = arith.constant 0 : index
    %36 = vector.load %arg11[%c0_32, %c0_33] : memref<4x328xf32, #tpu.memory_space<vmem>>, vector<4x64xf32>
    %37 = arith.mulf %36, %17 : vector<4x64xf32>
    %c0_34 = arith.constant 0 : index
    %c0_35 = arith.constant 0 : index
    %38 = vector.load %arg12[%c0_34, %c0_35] : memref<36x256xf32, #tpu.memory_space<vmem>>, vector<4x64xf32>
    tpu.vector_store %arg12[%c0_34, %c0_35], %37 {strides = array<i32>} : memref<36x256xf32, #tpu.memory_space<vmem>>, vector<4x64xf32>,
    %c0_36 = arith.constant 0 : index
    %c1 = arith.constant 1 : index
    %39 = vector.load %arg11[%c0_36, %c1] : memref<4x328xf32, #tpu.memory_space<vmem>>, vector<4x64xf32>
    %c4 = arith.constant 4 : index
    %c0_37 = arith.constant 0 : index
    %40 = vector.load %arg12[%c4, %c0_37] : memref<36x256xf32, #tpu.memory_space<vmem>>, vector<4x64xf32>
    tpu.vector_store %arg12[%c4, %c0_37], %39 {strides = array<i32>} : memref<36x256xf32, #tpu.memory_space<vmem>>, vector<4x64xf32>,
    %c0_38 = arith.constant 0 : index
    %c2_39 = arith.constant 2 : index
    %41 = vector.load %arg11[%c0_38, %c2_39] : memref<4x328xf32, #tpu.memory_space<vmem>>, vector<4x64xf32>
    %42 = arith.mulf %41, %20 : vector<4x64xf32>
    %c8 = arith.constant 8 : index
    %c0_40 = arith.constant 0 : index
    %43 = vector.load %arg12[%c8, %c0_40] : memref<36x256xf32, #tpu.memory_space<vmem>>, vector<4x64xf32>
    tpu.vector_store %arg12[%c8, %c0_40], %42 {strides = array<i32>} : memref<36x256xf32, #tpu.memory_space<vmem>>, vector<4x64xf32>,
    %c0_41 = arith.constant 0 : index
    %c8_42 = arith.constant 8 : index
    %44 = vector.load %arg11[%c0_41, %c8_42] : memref<4x328xf32, #tpu.memory_space<vmem>>, vector<4x64xf32>
    %45 = arith.mulf %44, %17 : vector<4x64xf32>
    %c12 = arith.constant 12 : index
    %c0_43 = arith.constant 0 : index
    %46 = vector.load %arg12[%c12, %c0_43] : memref<36x256xf32, #tpu.memory_space<vmem>>, vector<4x64xf32>
    tpu.vector_store %arg12[%c12, %c0_43], %45 {strides = array<i32>} : memref<36x256xf32, #tpu.memory_space<vmem>>, vector<4x64xf32>,
    %c0_44 = arith.constant 0 : index
    %c9_45 = arith.constant 9 : index
    %47 = vector.load %arg11[%c0_44, %c9_45] : memref<4x328xf32, #tpu.memory_space<vmem>>, vector<4x64xf32>
    %c16 = arith.constant 16 : index
    %c0_46 = arith.constant 0 : index
    %48 = vector.load %arg12[%c16, %c0_46] : memref<36x256xf32, #tpu.memory_space<vmem>>, vector<4x64xf32>
    tpu.vector_store %arg12[%c16, %c0_46], %47 {strides = array<i32>} : memref<36x256xf32, #tpu.memory_space<vmem>>, vector<4x64xf32>,
    %c0_47 = arith.constant 0 : index
    %c10 = arith.constant 10 : index
    %49 = vector.load %arg11[%c0_47, %c10] : memref<4x328xf32, #tpu.memory_space<vmem>>, vector<4x64xf32>
    %50 = arith.mulf %49, %20 : vector<4x64xf32>
    %c20 = arith.constant 20 : index
    %c0_48 = arith.constant 0 : index
    %51 = vector.load %arg12[%c20, %c0_48] : memref<36x256xf32, #tpu.memory_space<vmem>>, vector<4x64xf32>
    tpu.vector_store %arg12[%c20, %c0_48], %50 {strides = array<i32>} : memref<36x256xf32, #tpu.memory_space<vmem>>, vector<4x64xf32>,
    %c0_49 = arith.constant 0 : index
    %c16_50 = arith.constant 16 : index
    %52 = vector.load %arg11[%c0_49, %c16_50] : memref<4x328xf32, #tpu.memory_space<vmem>>, vector<4x64xf32>
    %53 = arith.mulf %52, %17 : vector<4x64xf32>
    %c24 = arith.constant 24 : index
    %c0_51 = arith.constant 0 : index
    %54 = vector.load %arg12[%c24, %c0_51] : memref<36x256xf32, #tpu.memory_space<vmem>>, vector<4x64xf32>
    tpu.vector_store %arg12[%c24, %c0_51], %53 {strides = array<i32>} : memref<36x256xf32, #tpu.memory_space<vmem>>, vector<4x64xf32>,
    %c0_52 = arith.constant 0 : index
    %c17 = arith.constant 17 : index
    %55 = vector.load %arg11[%c0_52, %c17] : memref<4x328xf32, #tpu.memory_space<vmem>>, vector<4x64xf32>
    %c28 = arith.constant 28 : index
    %c0_53 = arith.constant 0 : index
    %56 = vector.load %arg12[%c28, %c0_53] : memref<36x256xf32, #tpu.memory_space<vmem>>, vector<4x64xf32>
    tpu.vector_store %arg12[%c28, %c0_53], %55 {strides = array<i32>} : memref<36x256xf32, #tpu.memory_space<vmem>>, vector<4x64xf32>,
    %c0_54 = arith.constant 0 : index
    %c18 = arith.constant 18 : index
    %57 = vector.load %arg11[%c0_54, %c18] : memref<4x328xf32, #tpu.memory_space<vmem>>, vector<4x64xf32>
    %58 = arith.mulf %57, %20 : vector<4x64xf32>
    %c32 = arith.constant 32 : index
    %c0_55 = arith.constant 0 : index
    %59 = vector.load %arg12[%c32, %c0_55] : memref<36x256xf32, #tpu.memory_space<vmem>>, vector<4x64xf32>
    tpu.vector_store %arg12[%c32, %c0_55], %58 {strides = array<i32>} : memref<36x256xf32, #tpu.memory_space<vmem>>, vector<4x64xf32>,
    %c0_56 = arith.constant 0 : index
    %c82_57 = arith.constant 82 : index
    %60 = vector.load %arg11[%c0_56, %c82_57] : memref<4x328xf32, #tpu.memory_space<vmem>>, vector<4x64xf32>
    %61 = arith.mulf %60, %17 : vector<4x64xf32>
    %c0_58 = arith.constant 0 : index
    %c64 = arith.constant 64 : index
    %62 = vector.load %arg12[%c0_58, %c64] : memref<36x256xf32, #tpu.memory_space<vmem>>, vector<4x64xf32>
    tpu.vector_store %arg12[%c0_58, %c64], %61 {strides = array<i32>} : memref<36x256xf32, #tpu.memory_space<vmem>>, vector<4x64xf32>,
    %c0_59 = arith.constant 0 : index
    %c83 = arith.constant 83 : index
    %63 = vector.load %arg11[%c0_59, %c83] : memref<4x328xf32, #tpu.memory_space<vmem>>, vector<4x64xf32>
    %c4_60 = arith.constant 4 : index
    %c64_61 = arith.constant 64 : index
    %64 = vector.load %arg12[%c4_60, %c64_61] : memref<36x256xf32, #tpu.memory_space<vmem>>, vector<4x64xf32>
    tpu.vector_store %arg12[%c4_60, %c64_61], %63 {strides = array<i32>} : memref<36x256xf32, #tpu.memory_space<vmem>>, vector<4x64xf32>,
    %c0_62 = arith.constant 0 : index
    %c84 = arith.constant 84 : index
    %65 = vector.load %arg11[%c0_62, %c84] : memref<4x328xf32, #tpu.memory_space<vmem>>, vector<4x64xf32>
    %66 = arith.mulf %65, %20 : vector<4x64xf32>
    %c8_63 = arith.constant 8 : index
    %c64_64 = arith.constant 64 : index
    %67 = vector.load %arg12[%c8_63, %c64_64] : memref<36x256xf32, #tpu.memory_space<vmem>>, vector<4x64xf32>
    tpu.vector_store %arg12[%c8_63, %c64_64], %66 {strides = array<i32>} : memref<36x256xf32, #tpu.memory_space<vmem>>, vector<4x64xf32>,
    %c0_65 = arith.constant 0 : index
    %c90 = arith.constant 90 : index
    %68 = vector.load %arg11[%c0_65, %c90] : memref<4x328xf32, #tpu.memory_space<vmem>>, vector<4x64xf32>
    %69 = arith.mulf %68, %17 : vector<4x64xf32>
    %c12_66 = arith.constant 12 : index
    %c64_67 = arith.constant 64 : index
    %70 = vector.load %arg12[%c12_66, %c64_67] : memref<36x256xf32, #tpu.memory_space<vmem>>, vector<4x64xf32>
    tpu.vector_store %arg12[%c12_66, %c64_67], %69 {strides = array<i32>} : memref<36x256xf32, #tpu.memory_space<vmem>>, vector<4x64xf32>,
    %c0_68 = arith.constant 0 : index
    %c91_69 = arith.constant 91 : index
    %71 = vector.load %arg11[%c0_68, %c91_69] : memref<4x328xf32, #tpu.memory_space<vmem>>, vector<4x64xf32>
    %c16_70 = arith.constant 16 : index
    %c64_71 = arith.constant 64 : index
    %72 = vector.load %arg12[%c16_70, %c64_71] : memref<36x256xf32, #tpu.memory_space<vmem>>, vector<4x64xf32>
    tpu.vector_store %arg12[%c16_70, %c64_71], %71 {strides = array<i32>} : memref<36x256xf32, #tpu.memory_space<vmem>>, vector<4x64xf32>,
    %c0_72 = arith.constant 0 : index
    %c92 = arith.constant 92 : index
    %73 = vector.load %arg11[%c0_72, %c92] : memref<4x328xf32, #tpu.memory_space<vmem>>, vector<4x64xf32>
    %74 = arith.mulf %73, %20 : vector<4x64xf32>
    %c20_73 = arith.constant 20 : index
    %c64_74 = arith.constant 64 : index
    %75 = vector.load %arg12[%c20_73, %c64_74] : memref<36x256xf32, #tpu.memory_space<vmem>>, vector<4x64xf32>
    tpu.vector_store %arg12[%c20_73, %c64_74], %74 {strides = array<i32>} : memref<36x256xf32, #tpu.memory_space<vmem>>, vector<4x64xf32>,
    %c0_75 = arith.constant 0 : index
    %c98 = arith.constant 98 : index
    %76 = vector.load %arg11[%c0_75, %c98] : memref<4x328xf32, #tpu.memory_space<vmem>>, vector<4x64xf32>
    %77 = arith.mulf %76, %17 : vector<4x64xf32>
    %c24_76 = arith.constant 24 : index
    %c64_77 = arith.constant 64 : index
    %78 = vector.load %arg12[%c24_76, %c64_77] : memref<36x256xf32, #tpu.memory_space<vmem>>, vector<4x64xf32>
    tpu.vector_store %arg12[%c24_76, %c64_77], %77 {strides = array<i32>} : memref<36x256xf32, #tpu.memory_space<vmem>>, vector<4x64xf32>,
    %c0_78 = arith.constant 0 : index
    %c99 = arith.constant 99 : index
    %79 = vector.load %arg11[%c0_78, %c99] : memref<4x328xf32, #tpu.memory_space<vmem>>, vector<4x64xf32>
    %c28_79 = arith.constant 28 : index
    %c64_80 = arith.constant 64 : index
    %80 = vector.load %arg12[%c28_79, %c64_80] : memref<36x256xf32, #tpu.memory_space<vmem>>, vector<4x64xf32>
    tpu.vector_store %arg12[%c28_79, %c64_80], %79 {strides = array<i32>} : memref<36x256xf32, #tpu.memory_space<vmem>>, vector<4x64xf32>,
    %c0_81 = arith.constant 0 : index
    %c100 = arith.constant 100 : index
    %81 = vector.load %arg11[%c0_81, %c100] : memref<4x328xf32, #tpu.memory_space<vmem>>, vector<4x64xf32>
    %82 = arith.mulf %81, %20 : vector<4x64xf32>
    %c32_82 = arith.constant 32 : index
    %c64_83 = arith.constant 64 : index
    %83 = vector.load %arg12[%c32_82, %c64_83] : memref<36x256xf32, #tpu.memory_space<vmem>>, vector<4x64xf32>
    tpu.vector_store %arg12[%c32_82, %c64_83], %82 {strides = array<i32>} : memref<36x256xf32, #tpu.memory_space<vmem>>, vector<4x64xf32>,
    %c0_84 = arith.constant 0 : index
    %c164_85 = arith.constant 164 : index
    %84 = vector.load %arg11[%c0_84, %c164_85] : memref<4x328xf32, #tpu.memory_space<vmem>>, vector<4x64xf32>
    %85 = arith.mulf %84, %17 : vector<4x64xf32>
    %c0_86 = arith.constant 0 : index
    %c128 = arith.constant 128 : index
    %86 = vector.load %arg12[%c0_86, %c128] : memref<36x256xf32, #tpu.memory_space<vmem>>, vector<4x64xf32>
    tpu.vector_store %arg12[%c0_86, %c128], %85 {strides = array<i32>} : memref<36x256xf32, #tpu.memory_space<vmem>>, vector<4x64xf32>,
    %c0_87 = arith.constant 0 : index
    %c165 = arith.constant 165 : index
    %87 = vector.load %arg11[%c0_87, %c165] : memref<4x328xf32, #tpu.memory_space<vmem>>, vector<4x64xf32>
    %c4_88 = arith.constant 4 : index
    %c128_89 = arith.constant 128 : index
    %88 = vector.load %arg12[%c4_88, %c128_89] : memref<36x256xf32, #tpu.memory_space<vmem>>, vector<4x64xf32>
    tpu.vector_store %arg12[%c4_88, %c128_89], %87 {strides = array<i32>} : memref<36x256xf32, #tpu.memory_space<vmem>>, vector<4x64xf32>,
    %c0_90 = arith.constant 0 : index
    %c166 = arith.constant 166 : index
    %89 = vector.load %arg11[%c0_90, %c166] : memref<4x328xf32, #tpu.memory_space<vmem>>, vector<4x64xf32>
    %90 = arith.mulf %89, %20 : vector<4x64xf32>
    %c8_91 = arith.constant 8 : index
    %c128_92 = arith.constant 128 : index
    %91 = vector.load %arg12[%c8_91, %c128_92] : memref<36x256xf32, #tpu.memory_space<vmem>>, vector<4x64xf32>
    tpu.vector_store %arg12[%c8_91, %c128_92], %90 {strides = array<i32>} : memref<36x256xf32, #tpu.memory_space<vmem>>, vector<4x64xf32>,
    %c0_93 = arith.constant 0 : index
    %c172 = arith.constant 172 : index
    %92 = vector.load %arg11[%c0_93, %c172] : memref<4x328xf32, #tpu.memory_space<vmem>>, vector<4x64xf32>
    %93 = arith.mulf %92, %17 : vector<4x64xf32>
    %c12_94 = arith.constant 12 : index
    %c128_95 = arith.constant 128 : index
    %94 = vector.load %arg12[%c12_94, %c128_95] : memref<36x256xf32, #tpu.memory_space<vmem>>, vector<4x64xf32>
    tpu.vector_store %arg12[%c12_94, %c128_95], %93 {strides = array<i32>} : memref<36x256xf32, #tpu.memory_space<vmem>>, vector<4x64xf32>,
    %c0_96 = arith.constant 0 : index
    %c173_97 = arith.constant 173 : index
    %95 = vector.load %arg11[%c0_96, %c173_97] : memref<4x328xf32, #tpu.memory_space<vmem>>, vector<4x64xf32>
    %c16_98 = arith.constant 16 : index
    %c128_99 = arith.constant 128 : index
    %96 = vector.load %arg12[%c16_98, %c128_99] : memref<36x256xf32, #tpu.memory_space<vmem>>, vector<4x64xf32>
    tpu.vector_store %arg12[%c16_98, %c128_99], %95 {strides = array<i32>} : memref<36x256xf32, #tpu.memory_space<vmem>>, vector<4x64xf32>,
    %c0_100 = arith.constant 0 : index
    %c174 = arith.constant 174 : index
    %97 = vector.load %arg11[%c0_100, %c174] : memref<4x328xf32, #tpu.memory_space<vmem>>, vector<4x64xf32>
    %98 = arith.mulf %97, %20 : vector<4x64xf32>
    %c20_101 = arith.constant 20 : index
    %c128_102 = arith.constant 128 : index
    %99 = vector.load %arg12[%c20_101, %c128_102] : memref<36x256xf32, #tpu.memory_space<vmem>>, vector<4x64xf32>
    tpu.vector_store %arg12[%c20_101, %c128_102], %98 {strides = array<i32>} : memref<36x256xf32, #tpu.memory_space<vmem>>, vector<4x64xf32>,
    %c0_103 = arith.constant 0 : index
    %c180 = arith.constant 180 : index
    %100 = vector.load %arg11[%c0_103, %c180] : memref<4x328xf32, #tpu.memory_space<vmem>>, vector<4x64xf32>
    %101 = arith.mulf %100, %17 : vector<4x64xf32>
    %c24_104 = arith.constant 24 : index
    %c128_105 = arith.constant 128 : index
    %102 = vector.load %arg12[%c24_104, %c128_105] : memref<36x256xf32, #tpu.memory_space<vmem>>, vector<4x64xf32>
    tpu.vector_store %arg12[%c24_104, %c128_105], %101 {strides = array<i32>} : memref<36x256xf32, #tpu.memory_space<vmem>>, vector<4x64xf32>,
    %c0_106 = arith.constant 0 : index
    %c181 = arith.constant 181 : index
    %103 = vector.load %arg11[%c0_106, %c181] : memref<4x328xf32, #tpu.memory_space<vmem>>, vector<4x64xf32>
    %c28_107 = arith.constant 28 : index
    %c128_108 = arith.constant 128 : index
    %104 = vector.load %arg12[%c28_107, %c128_108] : memref<36x256xf32, #tpu.memory_space<vmem>>, vector<4x64xf32>
    tpu.vector_store %arg12[%c28_107, %c128_108], %103 {strides = array<i32>} : memref<36x256xf32, #tpu.memory_space<vmem>>, vector<4x64xf32>,
    %c0_109 = arith.constant 0 : index
    %c182 = arith.constant 182 : index
    %105 = vector.load %arg11[%c0_109, %c182] : memref<4x328xf32, #tpu.memory_space<vmem>>, vector<4x64xf32>
    %106 = arith.mulf %105, %20 : vector<4x64xf32>
    %c32_110 = arith.constant 32 : index
    %c128_111 = arith.constant 128 : index
    %107 = vector.load %arg12[%c32_110, %c128_111] : memref<36x256xf32, #tpu.memory_space<vmem>>, vector<4x64xf32>
    tpu.vector_store %arg12[%c32_110, %c128_111], %106 {strides = array<i32>} : memref<36x256xf32, #tpu.memory_space<vmem>>, vector<4x64xf32>,
    %c0_112 = arith.constant 0 : index
    %c246_113 = arith.constant 246 : index
    %108 = vector.load %arg11[%c0_112, %c246_113] : memref<4x328xf32, #tpu.memory_space<vmem>>, vector<4x64xf32>
    %109 = arith.mulf %108, %17 : vector<4x64xf32>
    %c0_114 = arith.constant 0 : index
    %c192 = arith.constant 192 : index
    %110 = vector.load %arg12[%c0_114, %c192] : memref<36x256xf32, #tpu.memory_space<vmem>>, vector<4x64xf32>
    tpu.vector_store %arg12[%c0_114, %c192], %109 {strides = array<i32>} : memref<36x256xf32, #tpu.memory_space<vmem>>, vector<4x64xf32>,
    %c0_115 = arith.constant 0 : index
    %c247 = arith.constant 247 : index
    %111 = vector.load %arg11[%c0_115, %c247] : memref<4x328xf32, #tpu.memory_space<vmem>>, vector<4x64xf32>
    %c4_116 = arith.constant 4 : index
    %c192_117 = arith.constant 192 : index
    %112 = vector.load %arg12[%c4_116, %c192_117] : memref<36x256xf32, #tpu.memory_space<vmem>>, vector<4x64xf32>
    tpu.vector_store %arg12[%c4_116, %c192_117], %111 {strides = array<i32>} : memref<36x256xf32, #tpu.memory_space<vmem>>, vector<4x64xf32>,
    %c0_118 = arith.constant 0 : index
    %c248 = arith.constant 248 : index
    %113 = vector.load %arg11[%c0_118, %c248] : memref<4x328xf32, #tpu.memory_space<vmem>>, vector<4x64xf32>
    %114 = arith.mulf %113, %20 : vector<4x64xf32>
    %c8_119 = arith.constant 8 : index
    %c192_120 = arith.constant 192 : index
    %115 = vector.load %arg12[%c8_119, %c192_120] : memref<36x256xf32, #tpu.memory_space<vmem>>, vector<4x64xf32>
    tpu.vector_store %arg12[%c8_119, %c192_120], %114 {strides = array<i32>} : memref<36x256xf32, #tpu.memory_space<vmem>>, vector<4x64xf32>,
    %c0_121 = arith.constant 0 : index
    %c254 = arith.constant 254 : index
    %116 = vector.load %arg11[%c0_121, %c254] : memref<4x328xf32, #tpu.memory_space<vmem>>, vector<4x64xf32>
    %117 = arith.mulf %116, %17 : vector<4x64xf32>
    %c12_122 = arith.constant 12 : index
    %c192_123 = arith.constant 192 : index
    %118 = vector.load %arg12[%c12_122, %c192_123] : memref<36x256xf32, #tpu.memory_space<vmem>>, vector<4x64xf32>
    tpu.vector_store %arg12[%c12_122, %c192_123], %117 {strides = array<i32>} : memref<36x256xf32, #tpu.memory_space<vmem>>, vector<4x64xf32>,
    %c0_124 = arith.constant 0 : index
    %c255_125 = arith.constant 255 : index
    %119 = vector.load %arg11[%c0_124, %c255_125] : memref<4x328xf32, #tpu.memory_space<vmem>>, vector<4x64xf32>
    %c16_126 = arith.constant 16 : index
    %c192_127 = arith.constant 192 : index
    %120 = vector.load %arg12[%c16_126, %c192_127] : memref<36x256xf32, #tpu.memory_space<vmem>>, vector<4x64xf32>
    tpu.vector_store %arg12[%c16_126, %c192_127], %119 {strides = array<i32>} : memref<36x256xf32, #tpu.memory_space<vmem>>, vector<4x64xf32>,
    %c0_128 = arith.constant 0 : index
    %c256 = arith.constant 256 : index
    %121 = vector.load %arg11[%c0_128, %c256] : memref<4x328xf32, #tpu.memory_space<vmem>>, vector<4x64xf32>
    %122 = arith.mulf %121, %20 : vector<4x64xf32>
    %c20_129 = arith.constant 20 : index
    %c192_130 = arith.constant 192 : index
    %123 = vector.load %arg12[%c20_129, %c192_130] : memref<36x256xf32, #tpu.memory_space<vmem>>, vector<4x64xf32>
    tpu.vector_store %arg12[%c20_129, %c192_130], %122 {strides = array<i32>} : memref<36x256xf32, #tpu.memory_space<vmem>>, vector<4x64xf32>,
    %c0_131 = arith.constant 0 : index
    %c262 = arith.constant 262 : index
    %124 = vector.load %arg11[%c0_131, %c262] : memref<4x328xf32, #tpu.memory_space<vmem>>, vector<4x64xf32>
    %125 = arith.mulf %124, %17 : vector<4x64xf32>
    %c24_132 = arith.constant 24 : index
    %c192_133 = arith.constant 192 : index
    %126 = vector.load %arg12[%c24_132, %c192_133] : memref<36x256xf32, #tpu.memory_space<vmem>>, vector<4x64xf32>
    tpu.vector_store %arg12[%c24_132, %c192_133], %125 {strides = array<i32>} : memref<36x256xf32, #tpu.memory_space<vmem>>, vector<4x64xf32>,
    %c0_134 = arith.constant 0 : index
    %c263 = arith.constant 263 : index
    %127 = vector.load %arg11[%c0_134, %c263] : memref<4x328xf32, #tpu.memory_space<vmem>>, vector<4x64xf32>
    %c28_135 = arith.constant 28 : index
    %c192_136 = arith.constant 192 : index
    %128 = vector.load %arg12[%c28_135, %c192_136] : memref<36x256xf32, #tpu.memory_space<vmem>>, vector<4x64xf32>
    tpu.vector_store %arg12[%c28_135, %c192_136], %127 {strides = array<i32>} : memref<36x256xf32, #tpu.memory_space<vmem>>, vector<4x64xf32>,
    %c0_137 = arith.constant 0 : index
    %c264 = arith.constant 264 : index
    %129 = vector.load %arg11[%c0_137, %c264] : memref<4x328xf32, #tpu.memory_space<vmem>>, vector<4x64xf32>
    %130 = arith.mulf %129, %20 : vector<4x64xf32>
    %c32_138 = arith.constant 32 : index
    %c192_139 = arith.constant 192 : index
    %131 = vector.load %arg12[%c32_138, %c192_139] : memref<36x256xf32, #tpu.memory_space<vmem>>, vector<4x64xf32>
    tpu.vector_store %arg12[%c32_138, %c192_139], %130 {strides = array<i32>} : memref<36x256xf32, #tpu.memory_space<vmem>>, vector<4x64xf32>,
    %c0_140 = arith.constant 0 : index
    %c0_141 = arith.constant 0 : index
    %132 = vector.load %arg12[%c0_140, %c0_141] : memref<36x256xf32, #tpu.memory_space<vmem>>, vector<36x256xf32>
    %cst_142 = arith.constant dense<0.000000e+00> : vector<4x256xf32>
    %133 = tpu.matmul %11, %132, %cst_142 {dimension_numbers = #tpu.dot_dimension_numbers<[1], [0], [0], [1], [0, 0, 1, 1], [], []>} : vector<4x36xf32>, vector<36x256xf32>, vector<4x256xf32> -> vector<4x256xf32>
    %134 = vector.broadcast %12 : vector<4x1xf32> to vector<4x256xf32>
    %135 = arith.addf %133, %134 : vector<4x256xf32>
    %cst_143 = arith.constant 0.000000e+00 : f32
    %136 = vector.broadcast %cst_143 : f32 to vector<4x256xf32>
    %137 = arith.maximumf %135, %136 : vector<4x256xf32>
    %cst_144 = arith.constant dense<0.000000e+00> : vector<16x256xf32>
    %138 = tpu.matmul %13, %137, %cst_144 {dimension_numbers = #tpu.dot_dimension_numbers<[1], [0], [0], [1], [0, 0, 1, 1], [], []>} : vector<16x4xf32>, vector<4x256xf32>, vector<16x256xf32> -> vector<16x256xf32>
    %139 = vector.broadcast %14 : vector<16x1xf32> to vector<16x256xf32>
    %140 = arith.addf %138, %139 : vector<16x256xf32>
    %141 = arith.addf %140, %22 : vector<16x256xf32>
    %cst_145 = arith.constant 0.000000e+00 : f32
    %142 = vector.broadcast %cst_145 : f32 to vector<16x256xf32>
    %143 = arith.maximumf %141, %142 : vector<16x256xf32>
    %c0_146 = arith.constant 0 : index
    %c0_147 = arith.constant 0 : index
    %c0_148 = arith.constant 0 : index
    %144 = vector.load %arg10[%c0_146, %c0_147, %c0_148] : memref<1x16x256xf32, #tpu.memory_space<vmem>>, vector<1x16x256xf32>
    %145 = vector.shape_cast %144 : vector<1x16x256xf32> to vector<16x256xf32>
    %146 = vector.shape_cast %143 : vector<16x256xf32> to vector<1x16x256xf32>
    tpu.vector_store %arg10[%c0_146, %c0_147, %c0_148], %146 {strides = array<i32>} : memref<1x16x256xf32, #tpu.memory_space<vmem>>, vector<1x16x256xf32>,
    return
  }
  func.func @transform_0(%arg0: i32, %arg1: i32) -> (i32, i32, i32) {
    %c0_i32 = arith.constant 0 : i32
    %c0_i32_0 = arith.constant 0 : i32
    return %arg0, %c0_i32, %arg1 : i32, i32, i32
  }
  func.func @transform_1(%arg0: i32, %arg1: i32) -> (i32, i32) {
    %c0_i32 = arith.constant 0 : i32
    %c0_i32_0 = arith.constant 0 : i32
    %c0_i32_1 = arith.constant 0 : i32
    return %c0_i32, %c0_i32_0 : i32, i32
  }
  func.func @transform_2(%arg0: i32, %arg1: i32) -> (i32, i32) {
    %c0_i32 = arith.constant 0 : i32
    %c0_i32_0 = arith.constant 0 : i32
    %c0_i32_1 = arith.constant 0 : i32
    return %c0_i32, %c0_i32_0 : i32, i32
  }
  func.func @transform_3(%arg0: i32, %arg1: i32) -> (i32, i32) {
    %c0_i32 = arith.constant 0 : i32
    %c0_i32_0 = arith.constant 0 : i32
    %c0_i32_1 = arith.constant 0 : i32
    return %c0_i32, %c0_i32_0 : i32, i32
  }
  func.func @transform_4(%arg0: i32, %arg1: i32) -> (i32, i32) {
    %c0_i32 = arith.constant 0 : i32
    %c0_i32_0 = arith.constant 0 : i32
    %c0_i32_1 = arith.constant 0 : i32
    return %c0_i32, %c0_i32_0 : i32, i32
  }
  func.func @transform_5(%arg0: i32, %arg1: i32) -> (i32, i32) {
    %c0_i32 = arith.constant 0 : i32
    %c0_i32_0 = arith.constant 0 : i32
    %c0_i32_1 = arith.constant 0 : i32
    return %c0_i32, %c0_i32_0 : i32, i32
  }
  func.func @transform_6(%arg0: i32, %arg1: i32) -> (i32, i32) {
    %c0_i32 = arith.constant 0 : i32
    %c0_i32_0 = arith.constant 0 : i32
    %c0_i32_1 = arith.constant 0 : i32
    return %c0_i32, %c0_i32_0 : i32, i32
  }
  func.func @transform_7(%arg0: i32, %arg1: i32) -> (i32, i32) {
    %c0_i32 = arith.constant 0 : i32
    %c0_i32_0 = arith.constant 0 : i32
    %c0_i32_1 = arith.constant 0 : i32
    return %c0_i32, %c0_i32_0 : i32, i32
  }
  func.func @transform_8(%arg0: i32, %arg1: i32) -> (i32, i32, i32) {
    %c0_i32 = arith.constant 0 : i32
    %c0_i32_0 = arith.constant 0 : i32
    return %arg0, %c0_i32, %arg1 : i32, i32, i32
  }
}

</mosaic_0001>

<llo_original>
// kernel: bottleneck_forward.1
$region0: #{bottleneck_forward.1}
  #allocation0 [shape = 'u32[]', space=smem, size = 0x4, offset = 0x4, fixed_abs, tag = 'smem constant byte address 0x4 - core index']
  #allocation1 [shape = 'u32[72,128]{1,0:T(1,128)}', space=vmem, size = 0x9000, scoped, tag = 'internal scratch']
  #allocation2 [shape = 'f32[4,328]{1,0:T(4,128)}', space=vmem, size = 0x1800, scoped, tag = 'scratch operand']
  #allocation3 [shape = 'f32[36,256]{1,0:T(8,128)}', space=vmem, size = 0xa000, scoped, tag = 'scratch operand']
  %s0 = inlined_call_operand.vmem [shape: f32[2,16,512], index: 0, kind: input, shape index: {}]
  %s1 = inlined_call_operand.vmem [shape: f32[4,16], index: 1, kind: input, shape index: {}]
  %s2 = inlined_call_operand.vmem [shape: f32[4,1], index: 2, kind: input, shape index: {}]
  %s3 = inlined_call_operand.vmem [shape: f32[4,36], index: 3, kind: input, shape index: {}]
  %s4 = inlined_call_operand.vmem [shape: f32[4,1], index: 4, kind: input, shape index: {}]
  %s5 = inlined_call_operand.vmem [shape: f32[16,4], index: 5, kind: input, shape index: {}]
  %s6 = inlined_call_operand.vmem [shape: f32[16,1], index: 6, kind: input, shape index: {}]
  %s7 = inlined_call_operand.vmem [shape: f32[3,64], index: 7, kind: input, shape index: {}]
  %s8 = inlined_call_operand.vmem [shape: f32[2,16,512], index: 8, kind: output, shape index: {}]
  %s9 = sld [smem:[#allocation0]]
  $region107: #{bottleneck_forward.1} parent=0
    _
  %s11 = ssub.s32 1, %s9
  %s12 = scalar_select 0, %s11, %s9
  $region1: #{bottleneck_forward.1} parent=0
    #allocation4 [shape = 'u8[32768]{0}', space=vmem, size = 0x8000, scoped, tag = 'input window, operand 0']
    #allocation5 [shape = 'u8[32768]{0}', space=vmem, size = 0x8000, scoped, tag = 'output window, operand 0']
    loop: start=0, step=1, limit=6
    $region2: #{bottleneck_forward.1} parent=1 // loop_pre_header
      _
    $region3: #{bottleneck_forward.1} parent=1 // loop_header
      %s14 = sphi 0, %s18
      %p15 = scmp.ge.s32.totalorder %s14, 6
      %s21 = sphi 0, %s33
      %s22 = sphi 0, %s29
      %s23 = sphi 0, %s21
      %s24 = sphi 0, %s22
      %s25 = sphi 0, %s23
      %s26 = sphi 0, %s24
      %s38 = sphi 0, %s40
      %s41 = sphi 0, %s38
      %s42 = sphi 0, %s41
      %s58 = sphi 0, %s42
      %s62 = sphi 0, %s62
      %s64 = sphi 0, %s62
      %s65 = sphi 0, %s64
      %s79 = sphi 0, %s65
      %s83 = sphi 0, %s83
      %s85 = sphi 0, %s83
      %s86 = sphi 0, %s85
      %s100 = sphi 0, %s86
      %s104 = sphi 0, %s104
      %s106 = sphi 0, %s104
      %s107 = sphi 0, %s106
      %s121 = sphi 0, %s107
      %s125 = sphi 0, %s125
      %s127 = sphi 0, %s125
      %s128 = sphi 0, %s127
      %s142 = sphi 0, %s128
      %s146 = sphi 0, %s146
      %s148 = sphi 0, %s146
      %s149 = sphi 0, %s148
      %s163 = sphi 0, %s149
      %s167 = sphi 0, %s167
      %s169 = sphi 0, %s167
      %s170 = sphi 0, %s169
      %s184 = sphi 0, %s170
      %s188 = sphi 0, %s188
      %s190 = sphi 0, %s188
      %s191 = sphi 0, %s190
      %s205 = sphi 0, %s191
      %s213 = sphi 0, %s215
      %s216 = sphi 0, %s213
      %s217 = sphi 0, %s216
      %s233 = sphi 0, %s217
    $region4: #{bottleneck_forward.1} parent=1 // loop_header_branch
      %17 = sbr.rel (%p15) target = $region8
    $region5: #{bottleneck_forward.1} parent=1 // loop_body
      %s19 = ssub.s32 %s14, 1
      %s20 = ssub.s32 %s14, 2
      %s27 = sadd.s32 1, %s22
      %p28 = scmp.ge.s32.totalorder %s27, 2
      %s29 = scalar_select %p28, 0, %s27
      %s30 = sadd.s32 1, %s21
      %s31 = scalar_select %p28, %s30, %s21
      %p32 = scmp.ge.s32.totalorder %s31, 2
      %s33 = scalar_select %p32, 0, %s31
      %s34 = ssub.s32 %s21, %s33
      %s35 = ssub.s32 %s22, %s29
      %s36 = sor.u32 %s34, %s35
      %p37 = scmp.eq.s32.totalorder %s36, 0
      %s39 = sadd.s32 %s38, 1
      %s40 = scalar_select %p37, %s38, %s39
      %p43 = pneg %p37
      %p44 = scmp.eq.s32.totalorder %s14, 3
      %p45 = por %p43, %p44
      %p46 = scmp.ne.s32.totalorder %s38, %s41
      %p47 = scmp.eq.s32.totalorder %s14, 0
      %p48 = por %p46, %p47
      %p49 = scmp.ne.s32.totalorder %s38, %s41
      %p50 = scmp.eq.s32.totalorder %s19, 3
      %p51 = por %p49, %p50
      %p52 = scmp.ne.s32.totalorder %s41, %s42
      %p53 = scmp.eq.s32.totalorder %s19, 0
      %p54 = por %p52, %p53
      %p55 = scmp.ne.s32.totalorder %s41, %s42
      %p56 = scmp.eq.s32.totalorder %s20, 3
      %p57 = por %p55, %p56
      %p59 = scmp.ne.s32.totalorder %s42, %s58
      %p60 = scmp.eq.s32.totalorder %s20, 0
      %p61 = por %p59, %p60
      %s63 = sadd.s32 %s62, 1
      %p66 = scmp.eq.s32.totalorder %s14, 3
      %p67 = scmp.ne.s32.totalorder %s62, %s64
      %p68 = scmp.eq.s32.totalorder %s14, 0
      %p69 = por %p67, %p68
      %p70 = scmp.ne.s32.totalorder %s62, %s64
      %p71 = scmp.eq.s32.totalorder %s19, 3
      %p72 = por %p70, %p71
      %p73 = scmp.ne.s32.totalorder %s64, %s65
      %p74 = scmp.eq.s32.totalorder %s19, 0
      %p75 = por %p73, %p74
      %p76 = scmp.ne.s32.totalorder %s64, %s65
      %p77 = scmp.eq.s32.totalorder %s20, 3
      %p78 = por %p76, %p77
      %p80 = scmp.ne.s32.totalorder %s65, %s79
      %p81 = scmp.eq.s32.totalorder %s20, 0
      %p82 = por %p80, %p81
      %s84 = sadd.s32 %s83, 1
      %p87 = scmp.eq.s32.totalorder %s14, 3
      %p88 = scmp.ne.s32.totalorder %s83, %s85
      %p89 = scmp.eq.s32.totalorder %s14, 0
      %p90 = por %p88, %p89
      %p91 = scmp.ne.s32.totalorder %s83, %s85
      %p92 = scmp.eq.s32.totalorder %s19, 3
      %p93 = por %p91, %p92
      %p94 = scmp.ne.s32.totalorder %s85, %s86
      %p95 = scmp.eq.s32.totalorder %s19, 0
      %p96 = por %p94, %p95
      %p97 = scmp.ne.s32.totalorder %s85, %s86
      %p98 = scmp.eq.s32.totalorder %s20, 3
      %p99 = por %p97, %p98
      %p101 = scmp.ne.s32.totalorder %s86, %s100
      %p102 = scmp.eq.s32.totalorder %s20, 0
      %p103 = por %p101, %p102
      %s105 = sadd.s32 %s104, 1
      %p108 = scmp.eq.s32.totalorder %s14, 3
      %p109 = scmp.ne.s32.totalorder %s104, %s106
      %p110 = scmp.eq.s32.totalorder %s14, 0
      %p111 = por %p109, %p110
      %p112 = scmp.ne.s32.totalorder %s104, %s106
      %p113 = scmp.eq.s32.totalorder %s19, 3
      %p114 = por %p112, %p113
      %p115 = scmp.ne.s32.totalorder %s106, %s107
      %p116 = scmp.eq.s32.totalorder %s19, 0
      %p117 = por %p115, %p116
      %p118 = scmp.ne.s32.totalorder %s106, %s107
      %p119 = scmp.eq.s32.totalorder %s20, 3
      %p120 = por %p118, %p119
      %p122 = scmp.ne.s32.totalorder %s107, %s121
      %p123 = scmp.eq.s32.totalorder %s20, 0
      %p124 = por %p122, %p123
      %s126 = sadd.s32 %s125, 1
      %p129 = scmp.eq.s32.totalorder %s14, 3
      %p130 = scmp.ne.s32.totalorder %s125, %s127
      %p131 = scmp.eq.s32.totalorder %s14, 0
      %p132 = por %p130, %p131
      %p133 = scmp.ne.s32.totalorder %s125, %s127
      %p134 = scmp.eq.s32.totalorder %s19, 3
      %p135 = por %p133, %p134
      %p136 = scmp.ne.s32.totalorder %s127, %s128
      %p137 = scmp.eq.s32.totalorder %s19, 0
      %p138 = por %p136, %p137
      %p139 = scmp.ne.s32.totalorder %s127, %s128
      %p140 = scmp.eq.s32.totalorder %s20, 3
      %p141 = por %p139, %p140
      %p143 = scmp.ne.s32.totalorder %s128, %s142
      %p144 = scmp.eq.s32.totalorder %s20, 0
      %p145 = por %p143, %p144
      %s147 = sadd.s32 %s146, 1
      %p150 = scmp.eq.s32.totalorder %s14, 3
      %p151 = scmp.ne.s32.totalorder %s146, %s148
      %p152 = scmp.eq.s32.totalorder %s14, 0
      %p153 = por %p151, %p152
      %p154 = scmp.ne.s32.totalorder %s146, %s148
      %p155 = scmp.eq.s32.totalorder %s19, 3
      %p156 = por %p154, %p155
      %p157 = scmp.ne.s32.totalorder %s148, %s149
      %p158 = scmp.eq.s32.totalorder %s19, 0
      %p159 = por %p157, %p158
      %p160 = scmp.ne.s32.totalorder %s148, %s149
      %p161 = scmp.eq.s32.totalorder %s20, 3
      %p162 = por %p160, %p161
      %p164 = scmp.ne.s32.totalorder %s149, %s163
      %p165 = scmp.eq.s32.totalorder %s20, 0
      %p166 = por %p164, %p165
      %s168 = sadd.s32 %s167, 1
      %p171 = scmp.eq.s32.totalorder %s14, 3
      %p172 = scmp.ne.s32.totalorder %s167, %s169
      %p173 = scmp.eq.s32.totalorder %s14, 0
      %p174 = por %p172, %p173
      %p175 = scmp.ne.s32.totalorder %s167, %s169
      %p176 = scmp.eq.s32.totalorder %s19, 3
      %p177 = por %p175, %p176
      %p178 = scmp.ne.s32.totalorder %s169, %s170
      %p179 = scmp.eq.s32.totalorder %s19, 0
      %p180 = por %p178, %p179
      %p181 = scmp.ne.s32.totalorder %s169, %s170
      %p182 = scmp.eq.s32.totalorder %s20, 3
      %p183 = por %p181, %p182
      %p185 = scmp.ne.s32.totalorder %s170, %s184
      %p186 = scmp.eq.s32.totalorder %s20, 0
      %p187 = por %p185, %p186
      %s189 = sadd.s32 %s188, 1
      %p192 = scmp.eq.s32.totalorder %s14, 3
      %p193 = scmp.ne.s32.totalorder %s188, %s190
      %p194 = scmp.eq.s32.totalorder %s14, 0
      %p195 = por %p193, %p194
      %p196 = scmp.ne.s32.totalorder %s188, %s190
      %p197 = scmp.eq.s32.totalorder %s19, 3
      %p198 = por %p196, %p197
      %p199 = scmp.ne.s32.totalorder %s190, %s191
      %p200 = scmp.eq.s32.totalorder %s19, 0
      %p201 = por %p199, %p200
      %p202 = scmp.ne.s32.totalorder %s190, %s191
      %p203 = scmp.eq.s32.totalorder %s20, 3
      %p204 = por %p202, %p203
      %p206 = scmp.ne.s32.totalorder %s191, %s205
      %p207 = scmp.eq.s32.totalorder %s20, 0
      %p208 = por %p206, %p207
      %s209 = ssub.s32 %s21, %s33
      %s210 = ssub.s32 %s22, %s29
      %s211 = sor.u32 %s209, %s210
      %p212 = scmp.eq.s32.totalorder %s211, 0
      %s214 = sadd.s32 %s213, 1
      %s215 = scalar_select %p212, %s213, %s214
      %p218 = pneg %p212
      %p219 = scmp.eq.s32.totalorder %s14, 3
      %p220 = por %p218, %p219
      %p221 = scmp.ne.s32.totalorder %s213, %s216
      %p222 = scmp.eq.s32.totalorder %s14, 0
      %p223 = por %p221, %p222
      %p224 = scmp.ne.s32.totalorder %s213, %s216
      %p225 = scmp.eq.s32.totalorder %s19, 3
      %p226 = por %p224, %p225
      %p227 = scmp.ne.s32.totalorder %s216, %s217
      %p228 = scmp.eq.s32.totalorder %s19, 0
      %p229 = por %p227, %p228
      %p230 = scmp.ne.s32.totalorder %s216, %s217
      %p231 = scmp.eq.s32.totalorder %s20, 3
      %p232 = por %p230, %p231
      %p234 = scmp.ne.s32.totalorder %s217, %s233
      %p235 = scmp.eq.s32.totalorder %s20, 0
      %p236 = por %p234, %p235
      %p237 = scmp.le.s32.totalorder 1, %s14
      %p238 = scmp.lt.s32.totalorder %s14, 5
      %p239 = pnand %p237, %p238
      %p240 = pneg %p239
      // Predicated region
      $region9: #{bottleneck_forward.1} parent=5 // pred_check
        _
      $region10: #{bottleneck_forward.1} parent=5 // pred_check_branch
        %242 = sbr.rel (%p239) target = $region12
      $region11: #{bottleneck_forward.1} parent=5 // pred_region
        %s243 = ssub.s32 %s14, 1
        // Predicated region
        $region13: #{bottleneck_forward.1} parent=11 // pred_check
          %p244 = pneg %p75
        $region14: #{bottleneck_forward.1} parent=11 // pred_check_branch
          %246 = sbr.rel (%p244) target = $region16
        $region15: #{bottleneck_forward.1} parent=11 // pred_region
          _
        $region16: #{bottleneck_forward.1} parent=11 // pred_fallthru
          _
        // Predicated region
        $region17: #{bottleneck_forward.1} parent=11 // pred_check
          %p247 = pneg %p96
        $region18: #{bottleneck_forward.1} parent=11 // pred_check_branch
          %249 = sbr.rel (%p247) target = $region20
        $region19: #{bottleneck_forward.1} parent=11 // pred_region
          _
        $region20: #{bottleneck_forward.1} parent=11 // pred_fallthru
          _
        // Predicated region
        $region21: #{bottleneck_forward.1} parent=11 // pred_check
          %p250 = pneg %p117
        $region22: #{bottleneck_forward.1} parent=11 // pred_check_branch
          %252 = sbr.rel (%p250) target = $region24
        $region23: #{bottleneck_forward.1} parent=11 // pred_region
          _
        $region24: #{bottleneck_forward.1} parent=11 // pred_fallthru
          _
        // Predicated region
        $region25: #{bottleneck_forward.1} parent=11 // pred_check
          %p253 = pneg %p138
        $region26: #{bottleneck_forward.1} parent=11 // pred_check_branch
          %255 = sbr.rel (%p253) target = $region28
        $region27: #{bottleneck_forward.1} parent=11 // pred_region
          _
        $region28: #{bottleneck_forward.1} parent=11 // pred_fallthru
          _
        // Predicated region
        $region29: #{bottleneck_forward.1} parent=11 // pred_check
          %p256 = pneg %p159
        $region30: #{bottleneck_forward.1} parent=11 // pred_check_branch
          %258 = sbr.rel (%p256) target = $region32
        $region31: #{bottleneck_forward.1} parent=11 // pred_region
          _
        $region32: #{bottleneck_forward.1} parent=11 // pred_fallthru
          _
        // Predicated region
        $region33: #{bottleneck_forward.1} parent=11 // pred_check
          %p259 = pneg %p180
        $region34: #{bottleneck_forward.1} parent=11 // pred_check_branch
          %261 = sbr.rel (%p259) target = $region36
        $region35: #{bottleneck_forward.1} parent=11 // pred_region
          _
        $region36: #{bottleneck_forward.1} parent=11 // pred_fallthru
          _
        // Predicated region
        $region37: #{bottleneck_forward.1} parent=11 // pred_check
          %p262 = pneg %p201
        $region38: #{bottleneck_forward.1} parent=11 // pred_check_branch
          %264 = sbr.rel (%p262) target = $region40
        $region39: #{bottleneck_forward.1} parent=11 // pred_region
          _
        $region40: #{bottleneck_forward.1} parent=11 // pred_fallthru
          _
      $region12: #{bottleneck_forward.1} parent=5 // pred_fallthru
        _
      %p265 = scmp.lt.s32.totalorder %s14, 4
      // Predicated region
      $region41: #{bottleneck_forward.1} parent=5 // pred_check
        %p266 = pneg %p265
      $region42: #{bottleneck_forward.1} parent=5 // pred_check_branch
        %268 = sbr.rel (%p266) target = $region44
      $region43: #{bottleneck_forward.1} parent=5 // pred_region
        // Predicated region
        $region45: #{bottleneck_forward.1} parent=43 // pred_check
          %p269 = pneg %p48
        $region46: #{bottleneck_forward.1} parent=43 // pred_check_branch
          %271 = sbr.rel (%p269) target = $region48
        $region47: #{bottleneck_forward.1} parent=43 // pred_region
          %s272 = sand.u32 %s38, 1
          %s273 = sand.u32 %s38, 1
          %s274 = smul.addr %s273, 32
          %s275 = scalar_lea.vmem [#allocation4], %s274
          %s276 = smul.u32 2, %s22
          %s277 = smul.addr %s21, 8
          %s278 = sadd.s32 %s276, %s277
          %s279 = smul.addr %s278, 8
          %s280 = scalar_lea.vmem %s0, %s279
          // Predicated region
          $region49: #{bottleneck_forward.1} parent=47 // pred_check
            _
          $region50: #{bottleneck_forward.1} parent=47 // pred_check_branch
            %282 = sbr.rel (0) target = $region52
          $region51: #{bottleneck_forward.1} parent=47 // pred_region
            // Predicated region
            $region53: #{bottleneck_forward.1} parent=51 // pred_check
              _
            $region54: #{bottleneck_forward.1} parent=51 // pred_check_branch
              %284 = sbr.rel (0) target = $region56
            $region55: #{bottleneck_forward.1} parent=51 // pred_region
              loop: start=0, step=1, limit=1
              $region57: #{bottleneck_forward.1} parent=55 // loop_pre_header
                _
              $region58: #{bottleneck_forward.1} parent=55 // loop_header
                %s286 = sphi 0, %s290
                %p287 = scmp.ge.s32.totalorder %s286, 1
                %s291 = sphi %s280, %s280
                %s292 = sphi %s275, %s275
              $region59: #{bottleneck_forward.1} parent=55 // loop_header_branch
                %289 = sbr.rel (%p287) target = $region63
              $region60: #{bottleneck_forward.1} parent=55 // loop_body
                %v293 = vld [vmem:[%s291] sm:$0xff]
                %294 = vst [vmem:[%s292] sm:$0xff] %v293
                %v295 = vld [vmem:[%s291 + $0x8] sm:$0xff]
                %296 = vst [vmem:[%s292 + $0x8] sm:$0xff] %v295
                %v297 = vld [vmem:[%s291 + $0x20] sm:$0xff]
                %298 = vst [vmem:[%s292 + $0x10] sm:$0xff] %v297
                %v299 = vld [vmem:[%s291 + $0x28] sm:$0xff]
                %300 = vst [vmem:[%s292 + $0x18] sm:$0xff] %v299
              $region61: #{bottleneck_forward.1} parent=55 // loop_footer
                %s290 = sadd.s32 1, %s286
              $region62: #{bottleneck_forward.1} parent=55 // loop_footer_branch
                %285 = sbr.rel target = $region58
              $region63: #{bottleneck_forward.1} parent=55 // loop_exit
                _
            $region56: #{bottleneck_forward.1} parent=51 // pred_fallthru
              _
            // Predicated region
            $region64: #{bottleneck_forward.1} parent=51 // pred_check
              _
            $region65: #{bottleneck_forward.1} parent=51 // pred_check_branch
              %302 = sbr.rel target = $region67
            $region66: #{bottleneck_forward.1} parent=51 // pred_region
              _
            $region67: #{bottleneck_forward.1} parent=51 // pred_fallthru
              _
          $region52: #{bottleneck_forward.1} parent=47 // pred_fallthru
            _
          %303 = vnop
        $region48: #{bottleneck_forward.1} parent=43 // pred_fallthru
          _
      $region44: #{bottleneck_forward.1} parent=5 // pred_fallthru
        _
      %p304 = scmp.le.s32.totalorder 1, %s14
      %p305 = scmp.lt.s32.totalorder %s14, 5
      %p306 = pnand %p304, %p305
      %p307 = pneg %p306
      // Predicated region
      $region68: #{bottleneck_forward.1} parent=5 // pred_check
        _
      $region69: #{bottleneck_forward.1} parent=5 // pred_check_branch
        %309 = sbr.rel (%p306) target = $region71
      $region70: #{bottleneck_forward.1} parent=5 // pred_region
        %s310 = ssub.s32 %s14, 1
        %s311 = sand.u32 %s41, 1
        %s312 = sand.u32 %s41, 1
        %s313 = smul.addr %s312, 32
        %s314 = scalar_lea.vmem [#allocation4], %s313
        // Predicated region
        $region72: #{bottleneck_forward.1} parent=70 // pred_check
          %p315 = pneg %p54
        $region73: #{bottleneck_forward.1} parent=70 // pred_check_branch
          %317 = sbr.rel (%p315) target = $region75
        $region74: #{bottleneck_forward.1} parent=70 // pred_region
          _
        $region75: #{bottleneck_forward.1} parent=70 // pred_fallthru
          _
        %s318 = sand.u32 %s41, 1
        %s319 = sand.u32 %s41, 1
        %s320 = smul.addr %s319, 32
        %s321 = scalar_lea.vmem [#allocation4], %s320
        %p322 = pneg %p54
        %p323 = pneg %p51
        %p324 = pneg %p75
        %p325 = pneg %p72
        %p326 = pneg %p96
        %p327 = pneg %p93
        %p328 = pneg %p117
        %p329 = pneg %p114
        %p330 = pneg %p138
        %p331 = pneg %p135
        %p332 = pneg %p159
        %p333 = pneg %p156
        %p334 = pneg %p180
        %p335 = pneg %p177
        %p336 = pneg %p201
        %p337 = pneg %p198
        %p338 = pneg %p229
        %p339 = pneg %p226
        %s340 = sand.u32 %s216, 1
        %s341 = sand.u32 %s216, 1
        %s342 = smul.addr %s341, 32
        %s343 = scalar_lea.vmem [#allocation5], %s342
        %s344 = smul.u32 2, %s24
        %s345 = smul.u32 2, %s24
        %vm346 = vcmask 68608
        %347 = vst.msk [vmem:[#allocation2] sm:$0xf] %vm346, 0.0
        %vm348 = vcmask 667208
        %349 = vst.msk [vmem:[#allocation2] sm:$0xf] %vm348, 0.0
        %vm350 = vcmask 741008
        %351 = vst.msk [vmem:[#allocation2] sm:$0xf] %vm350, 0.0
        %vm352 = vcmask 290008
        %353 = vst.msk [vmem:[#allocation2 + $0x4] sm:$0xf] %vm352, 0.0
        %vm354 = vcmask 363808
        %355 = vst.msk [vmem:[#allocation2 + $0x4] sm:$0xf] %vm354, 0.0
        %vm356 = vcmask 962408
        %357 = vst.msk [vmem:[#allocation2 + $0x4] sm:$0xf] %vm356, 0.0
        %vm358 = vcmask 1036208
        %359 = vst.msk [vmem:[#allocation2 + $0x4] sm:$0xf] %vm358, 0.0
        %vm360 = vcmask 585208
        %361 = vst.msk [vmem:[#allocation2 + $0x8] sm:$0xf] %vm360, 0.0
        %v362 = vld [vmem:[%s1] sm:$0xf]
        %v363 = vld [vmem:[%s2] sm:$0xf]
        %v364 = vld [vmem:[%s3] sm:$0xf]
        %v365 = vld [vmem:[%s4] sm:$0xf]
        %v366 = vld [vmem:[%s5] sm:$0xff]
        %v367 = vld [vmem:[%s5 + $0x8] sm:$0xff]
        %v368 = vld [vmem:[%s6] sm:$0xff]
        %v369 = vld [vmem:[%s6 + $0x8] sm:$0xff]
        %v370 = vld [vmem:[%s7] sm:$0x1]
        %v371 = vperm.slane %v370, 0
        %v372 = vld [vmem:[%s7 + $0x2] sm:$0x1]
        %v373 = vperm.slane %v372, 0
        %v374 = vld [vmem:[%s314] sm:$0xff]
        %v375 = vld [vmem:[%s314 + $0x8] sm:$0xff]
        %v376 = vld [vmem:[%s314 + $0x10] sm:$0xff]
        %v377 = vld [vmem:[%s314 + $0x18] sm:$0xff]
        %379 = vset.pattern.permute.xlu0 0
        %380 = vperm.xlu0 %379, %v363
        %v381 = vpop.permute.xlu0 %380
        %vm383 = vcmask 130048
        %v385 = vsel %vm383, %v362, 0
        %387 = vmatpush.msra.mxu0 0.0
        %388 = vmatpush.msra.mxu0 0.0
        %389 = vmatpush.msra.mxu0 0.0
        %390 = vmatpush.msra.mxu0 0.0
        %391 = vmatpush.msra.mxu0 0.0
        %392 = vmatpush.msra.mxu0 0.0
        %393 = vmatpush.msra.mxu0 0.0
        %394 = vmatpush.msra.mxu0 0.0
        %395 = vmatpush.msra.mxu0 0.0
        %396 = vmatpush.msra.mxu0 0.0
        %397 = vmatpush.msra.mxu0 0.0
        %398 = vmatpush.msra.mxu0 0.0
        %399 = vmatpush.msra.mxu0 0.0
        %400 = vmatpush.msra.mxu0 0.0
        %401 = vmatpush.msra.mxu0 %v376
        %402 = vmatpush.msra.mxu0 %v374
        %403 = vmatmul.f32.gmra.mxu0 %v385
        %v404 = vpop.f32.mrf.mxu0
        %v405 = vadd.f32 %v381, %v404
        %406 = vdwg.mxu0
        %407 = vmatpush.msra.mxu0 0.0
        %408 = vmatpush.msra.mxu0 0.0
        %409 = vmatpush.msra.mxu0 0.0
        %410 = vmatpush.msra.mxu0 0.0
        %411 = vmatpush.msra.mxu0 0.0
        %412 = vmatpush.msra.mxu0 0.0
        %413 = vmatpush.msra.mxu0 0.0
        %414 = vmatpush.msra.mxu0 0.0
        %415 = vmatpush.msra.mxu0 0.0
        %416 = vmatpush.msra.mxu0 0.0
        %417 = vmatpush.msra.mxu0 0.0
        %418 = vmatpush.msra.mxu0 0.0
        %419 = vmatpush.msra.mxu0 0.0
        %420 = vmatpush.msra.mxu0 0.0
        %421 = vmatpush.msra.mxu0 %v377
        %422 = vmatpush.msra.mxu0 %v375
        %423 = vmatmul.f32.gmra.mxu0 %v385
        %v424 = vpop.f32.mrf.mxu0
        %v425 = vadd.f32 %v381, %v424
        %426 = vdwg.mxu0
        %v427 = vmax.f32 %v405, 0.0
        %v428 = vmax.f32 %v425, 0.0
        %430 = vrot.lane.b32.xlu0 %v427, 9
        %v431 = vpop.permute.xlu0 %430
        %vm433 = vcmask 592968
        %434 = vst.msk [vmem:[#allocation2] sm:$0xf] %vm433, %v431
        %435 = vrot.lane.b32.xlu0 %v427, 27
        %v436 = vpop.permute.xlu0 %435
        %v437 = vrot.slane %v436, 4
        %vm438 = vcmask 220160
        %v439 = vsel %vm438, %v437, %v436
        %vm441 = vcmask 1044184
        %vm442 = vcmask 220164
        %vm443 = vmor %vm442, %vm441
        %444 = vst.msk [vmem:[#allocation2] sm:$0xff] %vm443, %v439
        %446 = vrot.lane.b32.xlu0 %v428, 45
        %v447 = vpop.permute.xlu0 %446
        %vm449 = vcmask 888168
        %450 = vst.msk [vmem:[#allocation2 + $0x4] sm:$0xf] %vm449, %v447
        %451 = vrot.lane.b32.xlu0 %v428, 63
        %v452 = vpop.permute.xlu0 %451
        %v453 = vrot.slane %v452, 4
        %vm454 = vcmask 515072
        %v455 = vsel %vm454, %v453, %v452
        %vm457 = vcmask 1044472
        %vm458 = vcmask 515076
        %vm459 = vmor %vm458, %vm457
        %460 = vst.msk [vmem:[#allocation2 + $0x4] sm:$0xff] %vm459, %v455
        %v461 = vld [vmem:[#allocation2] sm:$0xf]
        %v462 = vmul.f32 %v461, %v371
        %vm463 = vcmask 519168
        %464 = vst.msk [vmem:[#allocation3] sm:$0xf] %vm463, %v462
        %v465 = vld [vmem:[#allocation2] sm:$0xf]
        %s467 = scalar_lea.vmem [#allocation1], 1
        %468 = vst [vmem:[%s467] ss:$2 sm:$0xff] %v465
        %v469 = vld.sshfl [vmem:[#allocation1] sm:$0xff pattern:$0x75316420]
        %470 = vrot.lane.b32.xlu0 %v469, 127
        %v471 = vpop.permute.xlu0 %470
        %vm473 = vcmask 523268
        %474 = vst.msk [vmem:[#allocation3] sm:$0xf0] %vm473, %v471
        %v475 = vld [vmem:[#allocation2] sm:$0xf]
        %477 = vrot.lane.b32.xlu0 %v373, 2
        %v478 = vpop.permute.xlu0 %477
        %v480 = vmul.f32 %v475, %v478
        %482 = vst [vmem:[#allocation1] ss:$2 sm:$0xff] %v480
        %v483 = vld.sshfl [vmem:[#allocation1] sm:$0xff pattern:$0x75316420]
        %484 = vrot.lane.b32.xlu0 %v483, 126
        %v485 = vpop.permute.xlu0 %484
        %487 = vst.msk [vmem:[#allocation3 + $0x10] sm:$0xf] %vm463, %v485
        %v488 = vld [vmem:[#allocation2] sm:$0xf]
        %490 = vrot.lane.b32.xlu0 %v371, 8
        %v491 = vpop.permute.xlu0 %490
        %v493 = vmul.f32 %v488, %v491
        %s495 = scalar_lea.vmem [#allocation1], 1
        %496 = vst [vmem:[%s495] ss:$2 sm:$0xff] %v493
        %v497 = vld.sshfl [vmem:[#allocation1] sm:$0xff pattern:$0x75316420]
        %498 = vrot.lane.b32.xlu0 %v497, 120
        %v499 = vpop.permute.xlu0 %498
        %501 = vst.msk [vmem:[#allocation3 + $0x10] sm:$0xf0] %vm473, %v499
        %v502 = vld [vmem:[#allocation2] sm:$0xf]
        %504 = vst [vmem:[#allocation1] ss:$2 sm:$0xff] %v502
        %v505 = vld.sshfl [vmem:[#allocation1] sm:$0xff pattern:$0x75316420]
        %506 = vrot.lane.b32.xlu0 %v505, 119
        %v507 = vpop.permute.xlu0 %506
        %509 = vst.msk [vmem:[#allocation3 + $0x20] sm:$0xf] %vm463, %v507
        %v510 = vld [vmem:[#allocation2] sm:$0xf]
        %511 = vrot.lane.b32.xlu0 %v373, 10
        %v512 = vpop.permute.xlu0 %511
        %v514 = vmul.f32 %v510, %v512
        %s516 = scalar_lea.vmem [#allocation1], 1
        %517 = vst [vmem:[%s516] ss:$2 sm:$0xff] %v514
        %v518 = vld.sshfl [vmem:[#allocation1] sm:$0xff pattern:$0x75316420]
        %519 = vrot.lane.b32.xlu0 %v518, 118
        %v520 = vpop.permute.xlu0 %519
        %522 = vst.msk [vmem:[#allocation3 + $0x20] sm:$0xf0] %vm473, %v520
        %v523 = vld [vmem:[#allocation2] sm:$0xf]
        %524 = vrot.lane.b32.xlu0 %v371, 16
        %v525 = vpop.permute.xlu0 %524
        %v527 = vmul.f32 %v523, %v525
        %529 = vst [vmem:[#allocation1] ss:$2 sm:$0xff] %v527
        %v530 = vld.sshfl [vmem:[#allocation1] sm:$0xff pattern:$0x75316420]
        %531 = vrot.lane.b32.xlu0 %v530, 112
        %v532 = vpop.permute.xlu0 %531
        %534 = vst.msk [vmem:[#allocation3 + $0x30] sm:$0xf] %vm463, %v532
        %v535 = vld [vmem:[#allocation2] sm:$0xf]
        %s537 = scalar_lea.vmem [#allocation1], 1
        %538 = vst [vmem:[%s537] ss:$2 sm:$0xff] %v535
        %v539 = vld.sshfl [vmem:[#allocation1] sm:$0xff pattern:$0x75316420]
        %540 = vrot.lane.b32.xlu0 %v539, 111
        %v541 = vpop.permute.xlu0 %540
        %543 = vst.msk [vmem:[#allocation3 + $0x30] sm:$0xf0] %vm473, %v541
        %v544 = vld [vmem:[#allocation2] sm:$0xf]
        %545 = vrot.lane.b32.xlu0 %v373, 18
        %v546 = vpop.permute.xlu0 %545
        %v548 = vmul.f32 %v544, %v546
        %550 = vst [vmem:[#allocation1] ss:$2 sm:$0xff] %v548
        %v551 = vld.sshfl [vmem:[#allocation1] sm:$0xff pattern:$0x75316420]
        %552 = vrot.lane.b32.xlu0 %v551, 110
        %v553 = vpop.permute.xlu0 %552
        %555 = vst.msk [vmem:[#allocation3 + $0x40] sm:$0xf] %vm463, %v553
        %v556 = vld [vmem:[#allocation2] sm:$0xff]
        %557 = vrot.lane.b32.xlu0 %v371, 82
        %v558 = vpop.permute.xlu0 %557
        %v559 = vrot.slane %v558, 4
        %vm560 = vcmask 670720
        %v561 = vsel %vm560, %v559, %v558
        %v563 = vmul.f32 %v556, %v561
        %565 = vst [vmem:[#allocation1] ss:$2 sm:$0xff] %v563
        %v566 = vld.sshfl [vmem:[#allocation1] sm:$0xff pattern:$0x75316420]
        %v567 = vld.sshfl [vmem:[#allocation1 + $0x8] sm:$0xff pattern:$0x75316420]
        %568 = vrot.lane.b32.xlu0 %v566, 110
        %v569 = vpop.permute.xlu0 %568
        %570 = vrot.lane.b32.xlu0 %v567, 110
        %v571 = vpop.permute.xlu0 %570
        %vm572 = vcmask 900096
        %v573 = vsel %vm572, %v569, %v571
        %vm575 = vcmask 1043968
        %576 = vst.msk [vmem:[#allocation3] sm:$0xf] %vm575, %v573
        %v577 = vld [vmem:[#allocation2] sm:$0xff]
        %s579 = scalar_lea.vmem [#allocation1], 1
        %580 = vst [vmem:[%s579] ss:$2 sm:$0xff] %v577
        %v581 = vld.sshfl [vmem:[#allocation1] sm:$0xff pattern:$0x75316420]
        %v582 = vld.sshfl [vmem:[#allocation1 + $0x8] sm:$0xff pattern:$0x75316420]
        %583 = vrot.lane.b32.xlu0 %v581, 109
        %v584 = vpop.permute.xlu0 %583
        %585 = vrot.lane.b32.xlu0 %v582, 109
        %v586 = vpop.permute.xlu0 %585
        %vm587 = vcmask 891904
        %v588 = vsel %vm587, %v584, %v586
        %vm590 = vcmask 1048068
        %591 = vst.msk [vmem:[#allocation3] sm:$0xf0] %vm590, %v588
        %v592 = vld [vmem:[#allocation2] sm:$0xff]
        %593 = vrot.lane.b32.xlu0 %v373, 84
        %v594 = vpop.permute.xlu0 %593
        %v595 = vrot.slane %v594, 4
        %vm596 = vcmask 687104
        %v597 = vsel %vm596, %v595, %v594
        %v599 = vmul.f32 %v592, %v597
        %601 = vst [vmem:[#allocation1] ss:$2 sm:$0xff] %v599
        %v602 = vld.sshfl [vmem:[#allocation1] sm:$0xff pattern:$0x75316420]
        %v603 = vld.sshfl [vmem:[#allocation1 + $0x8] sm:$0xff pattern:$0x75316420]
        %604 = vrot.lane.b32.xlu0 %v602, 108
        %v605 = vpop.permute.xlu0 %604
        %606 = vrot.lane.b32.xlu0 %v603, 108
        %v607 = vpop.permute.xlu0 %606
        %vm608 = vcmask 883712
        %v609 = vsel %vm608, %v605, %v607
        %611 = vst.msk [vmem:[#allocation3 + $0x10] sm:$0xf] %vm575, %v609
        %v612 = vld [vmem:[#allocation2] sm:$0xff]
        %613 = vrot.lane.b32.xlu0 %v371, 90
        %v614 = vpop.permute.xlu0 %613
        %v615 = vrot.slane %v614, 4
        %vm616 = vcmask 736256
        %v617 = vsel %vm616, %v615, %v614
        %v619 = vmul.f32 %v612, %v617
        %s621 = scalar_lea.vmem [#allocation1], 1
        %622 = vst [vmem:[%s621] ss:$2 sm:$0xff] %v619
        %v623 = vld.sshfl [vmem:[#allocation1] sm:$0xff pattern:$0x75316420]
        %v624 = vld.sshfl [vmem:[#allocation1 + $0x8] sm:$0xff pattern:$0x75316420]
        %625 = vrot.lane.b32.xlu0 %v623, 102
        %v626 = vpop.permute.xlu0 %625
        %627 = vrot.lane.b32.xlu0 %v624, 102
        %v628 = vpop.permute.xlu0 %627
        %vm629 = vcmask 834560
        %v630 = vsel %vm629, %v626, %v628
        %632 = vst.msk [vmem:[#allocation3 + $0x10] sm:$0xf0] %vm590, %v630
        %v633 = vld [vmem:[#allocation2] sm:$0xff]
        %635 = vst [vmem:[#allocation1] ss:$2 sm:$0xff] %v633
        %v636 = vld.sshfl [vmem:[#allocation1] sm:$0xff pattern:$0x75316420]
        %v637 = vld.sshfl [vmem:[#allocation1 + $0x8] sm:$0xff pattern:$0x75316420]
        %638 = vrot.lane.b32.xlu0 %v636, 101
        %v639 = vpop.permute.xlu0 %638
        %640 = vrot.lane.b32.xlu0 %v637, 101
        %v641 = vpop.permute.xlu0 %640
        %vm642 = vcmask 826368
        %v643 = vsel %vm642, %v639, %v641
        %645 = vst.msk [vmem:[#allocation3 + $0x20] sm:$0xf] %vm575, %v643
        %v646 = vld [vmem:[#allocation2] sm:$0xff]
        %647 = vrot.lane.b32.xlu0 %v373, 92
        %v648 = vpop.permute.xlu0 %647
        %v649 = vrot.slane %v648, 4
        %vm650 = vcmask 752640
        %v651 = vsel %vm650, %v649, %v648
        %v653 = vmul.f32 %v646, %v651
        %s655 = scalar_lea.vmem [#allocation1], 1
        %656 = vst [vmem:[%s655] ss:$2 sm:$0xff] %v653
        %v657 = vld.sshfl [vmem:[#allocation1] sm:$0xff pattern:$0x75316420]
        %v658 = vld.sshfl [vmem:[#allocation1 + $0x8] sm:$0xff pattern:$0x75316420]
        %659 = vrot.lane.b32.xlu0 %v657, 100
        %v660 = vpop.permute.xlu0 %659
        %661 = vrot.lane.b32.xlu0 %v658, 100
        %v662 = vpop.permute.xlu0 %661
        %vm663 = vcmask 818176
        %v664 = vsel %vm663, %v660, %v662
        %666 = vst.msk [vmem:[#allocation3 + $0x20] sm:$0xf0] %vm590, %v664
        %v667 = vld [vmem:[#allocation2] sm:$0xff]
        %668 = vrot.lane.b32.xlu0 %v371, 98
        %v669 = vpop.permute.xlu0 %668
        %v670 = vrot.slane %v669, 4
        %vm671 = vcmask 801792
        %v672 = vsel %vm671, %v670, %v669
        %v674 = vmul.f32 %v667, %v672
        %676 = vst [vmem:[#allocation1] ss:$2 sm:$0xff] %v674
        %v677 = vld.sshfl [vmem:[#allocation1] sm:$0xff pattern:$0x75316420]
        %v678 = vld.sshfl [vmem:[#allocation1 + $0x8] sm:$0xff pattern:$0x75316420]
        %679 = vrot.lane.b32.xlu0 %v677, 94
        %v680 = vpop.permute.xlu0 %679
        %681 = vrot.lane.b32.xlu0 %v678, 94
        %v682 = vpop.permute.xlu0 %681
        %vm683 = vcmask 769024
        %v684 = vsel %vm683, %v680, %v682
        %686 = vst.msk [vmem:[#allocation3 + $0x30] sm:$0xf] %vm575, %v684
        %v687 = vld [vmem:[#allocation2] sm:$0xff]
        %s689 = scalar_lea.vmem [#allocation1], 1
        %690 = vst [vmem:[%s689] ss:$2 sm:$0xff] %v687
        %v691 = vld.sshfl [vmem:[#allocation1] sm:$0xff pattern:$0x75316420]
        %v692 = vld.sshfl [vmem:[#allocation1 + $0x8] sm:$0xff pattern:$0x75316420]
        %693 = vrot.lane.b32.xlu0 %v691, 93
        %v694 = vpop.permute.xlu0 %693
        %695 = vrot.lane.b32.xlu0 %v692, 93
        %v696 = vpop.permute.xlu0 %695
        %vm697 = vcmask 760832
        %v698 = vsel %vm697, %v694, %v696
        %700 = vst.msk [vmem:[#allocation3 + $0x30] sm:$0xf0] %vm590, %v698
        %v701 = vld [vmem:[#allocation2] sm:$0xff]
        %702 = vrot.lane.b32.xlu0 %v373, 100
        %v703 = vpop.permute.xlu0 %702
        %v704 = vrot.slane %v703, 4
        %v705 = vsel %vm663, %v704, %v703
        %v707 = vmul.f32 %v701, %v705
        %709 = vst [vmem:[#allocation1] ss:$2 sm:$0xff] %v707
        %v710 = vld.sshfl [vmem:[#allocation1] sm:$0xff pattern:$0x75316420]
        %v711 = vld.sshfl [vmem:[#allocation1 + $0x8] sm:$0xff pattern:$0x75316420]
        %712 = vrot.lane.b32.xlu0 %v710, 92
        %v713 = vpop.permute.xlu0 %712
        %714 = vrot.lane.b32.xlu0 %v711, 92
        %v715 = vpop.permute.xlu0 %714
        %v716 = vsel %vm650, %v713, %v715
        %718 = vst.msk [vmem:[#allocation3 + $0x40] sm:$0xf] %vm575, %v716
        %v719 = vld [vmem:[#allocation2 + $0x4] sm:$0xf]
        %720 = vrot.lane.b32.xlu0 %v371, 36
        %v721 = vpop.permute.xlu0 %720
        %v723 = vmul.f32 %v719, %v721
        %725 = vst [vmem:[#allocation1] ss:$2 sm:$0xff] %v723
        %v726 = vld.sshfl [vmem:[#allocation1] sm:$0xff pattern:$0x75316420]
        %727 = vrot.lane.b32.xlu0 %v726, 92
        %v728 = vpop.permute.xlu0 %727
        %730 = vst.msk [vmem:[#allocation3 + $0x8] sm:$0xf] %vm463, %v728
        %v731 = vld [vmem:[#allocation2 + $0x4] sm:$0xf]
        %s733 = scalar_lea.vmem [#allocation1], 1
        %734 = vst [vmem:[%s733] ss:$2 sm:$0xff] %v731
        %v735 = vld.sshfl [vmem:[#allocation1] sm:$0xff pattern:$0x75316420]
        %736 = vrot.lane.b32.xlu0 %v735, 91
        %v737 = vpop.permute.xlu0 %736
        %739 = vst.msk [vmem:[#allocation3 + $0x8] sm:$0xf0] %vm473, %v737
        %v740 = vld [vmem:[#allocation2 + $0x4] sm:$0xf]
        %741 = vrot.lane.b32.xlu0 %v373, 38
        %v742 = vpop.permute.xlu0 %741
        %v744 = vmul.f32 %v740, %v742
        %746 = vst [vmem:[#allocation1] ss:$2 sm:$0xff] %v744
        %v747 = vld.sshfl [vmem:[#allocation1] sm:$0xff pattern:$0x75316420]
        %748 = vrot.lane.b32.xlu0 %v747, 90
        %v749 = vpop.permute.xlu0 %748
        %751 = vst.msk [vmem:[#allocation3 + $0x18] sm:$0xf] %vm463, %v749
        %v752 = vld [vmem:[#allocation2 + $0x4] sm:$0xf]
        %753 = vrot.lane.b32.xlu0 %v371, 44
        %v754 = vpop.permute.xlu0 %753
        %v756 = vmul.f32 %v752, %v754
        %s758 = scalar_lea.vmem [#allocation1], 1
        %759 = vst [vmem:[%s758] ss:$2 sm:$0xff] %v756
        %v760 = vld.sshfl [vmem:[#allocation1] sm:$0xff pattern:$0x75316420]
        %761 = vrot.lane.b32.xlu0 %v760, 84
        %v762 = vpop.permute.xlu0 %761
        %764 = vst.msk [vmem:[#allocation3 + $0x18] sm:$0xf0] %vm473, %v762
        %v765 = vld [vmem:[#allocation2 + $0x4] sm:$0xf]
        %767 = vst [vmem:[#allocation1] ss:$2 sm:$0xff] %v765
        %v768 = vld.sshfl [vmem:[#allocation1] sm:$0xff pattern:$0x75316420]
        %769 = vrot.lane.b32.xlu0 %v768, 83
        %v770 = vpop.permute.xlu0 %769
        %772 = vst.msk [vmem:[#allocation3 + $0x28] sm:$0xf] %vm463, %v770
        %v773 = vld [vmem:[#allocation2 + $0x4] sm:$0xf]
        %774 = vrot.lane.b32.xlu0 %v373, 46
        %v775 = vpop.permute.xlu0 %774
        %v777 = vmul.f32 %v773, %v775
        %s779 = scalar_lea.vmem [#allocation1], 1
        %780 = vst [vmem:[%s779] ss:$2 sm:$0xff] %v777
        %v781 = vld.sshfl [vmem:[#allocation1] sm:$0xff pattern:$0x75316420]
        %782 = vrot.lane.b32.xlu0 %v781, 82
        %v783 = vpop.permute.xlu0 %782
        %785 = vst.msk [vmem:[#allocation3 + $0x28] sm:$0xf0] %vm473, %v783
        %v786 = vld [vmem:[#allocation2 + $0x4] sm:$0xf]
        %787 = vrot.lane.b32.xlu0 %v371, 52
        %v788 = vpop.permute.xlu0 %787
        %v790 = vmul.f32 %v786, %v788
        %792 = vst [vmem:[#allocation1] ss:$2 sm:$0xff] %v790
        %v793 = vld.sshfl [vmem:[#allocation1] sm:$0xff pattern:$0x75316420]
        %794 = vrot.lane.b32.xlu0 %v793, 76
        %v795 = vpop.permute.xlu0 %794
        %797 = vst.msk [vmem:[#allocation3 + $0x38] sm:$0xf] %vm463, %v795
        %v798 = vld [vmem:[#allocation2 + $0x4] sm:$0xf]
        %s800 = scalar_lea.vmem [#allocation1], 1
        %801 = vst [vmem:[%s800] ss:$2 sm:$0xff] %v798
        %v802 = vld.sshfl [vmem:[#allocation1] sm:$0xff pattern:$0x75316420]
        %803 = vrot.lane.b32.xlu0 %v802, 75
        %v804 = vpop.permute.xlu0 %803
        %806 = vst.msk [vmem:[#allocation3 + $0x38] sm:$0xf0] %vm473, %v804
        %v807 = vld [vmem:[#allocation2 + $0x4] sm:$0xf]
        %808 = vrot.lane.b32.xlu0 %v373, 54
        %v809 = vpop.permute.xlu0 %808
        %v811 = vmul.f32 %v807, %v809
        %813 = vst [vmem:[#allocation1] ss:$2 sm:$0xff] %v811
        %v814 = vld.sshfl [vmem:[#allocation1] sm:$0xff pattern:$0x75316420]
        %815 = vrot.lane.b32.xlu0 %v814, 74
        %v816 = vpop.permute.xlu0 %815
        %818 = vst.msk [vmem:[#allocation3 + $0x48] sm:$0xf] %vm463, %v816
        %v819 = vld [vmem:[#allocation2 + $0x4] sm:$0xff]
        %820 = vrot.lane.b32.xlu0 %v371, 118
        %v821 = vpop.permute.xlu0 %820
        %v822 = vrot.slane %v821, 4
        %vm823 = vcmask 965632
        %v824 = vsel %vm823, %v822, %v821
        %v826 = vmul.f32 %v819, %v824
        %828 = vst [vmem:[#allocation1] ss:$2 sm:$0xff] %v826
        %v829 = vld.sshfl [vmem:[#allocation1] sm:$0xff pattern:$0x75316420]
        %v830 = vld.sshfl [vmem:[#allocation1 + $0x8] sm:$0xff pattern:$0x75316420]
        %831 = vrot.lane.b32.xlu0 %v829, 74
        %v832 = vpop.permute.xlu0 %831
        %833 = vrot.lane.b32.xlu0 %v830, 74
        %v834 = vpop.permute.xlu0 %833
        %vm835 = vcmask 605184
        %v836 = vsel %vm835, %v832, %v834
        %838 = vst.msk [vmem:[#allocation3 + $0x8] sm:$0xf] %vm575, %v836
        %v839 = vld [vmem:[#allocation2 + $0x4] sm:$0xff]
        %s841 = scalar_lea.vmem [#allocation1], 1
        %842 = vst [vmem:[%s841] ss:$2 sm:$0xff] %v839
        %v843 = vld.sshfl [vmem:[#allocation1] sm:$0xff pattern:$0x75316420]
        %v844 = vld.sshfl [vmem:[#allocation1 + $0x8] sm:$0xff pattern:$0x75316420]
        %845 = vrot.lane.b32.xlu0 %v843, 73
        %v846 = vpop.permute.xlu0 %845
        %847 = vrot.lane.b32.xlu0 %v844, 73
        %v848 = vpop.permute.xlu0 %847
        %vm849 = vcmask 596992
        %v850 = vsel %vm849, %v846, %v848
        %852 = vst.msk [vmem:[#allocation3 + $0x8] sm:$0xf0] %vm590, %v850
        %v853 = vld [vmem:[#allocation2 + $0x4] sm:$0xff]
        %854 = vrot.lane.b32.xlu0 %v373, 120
        %v855 = vpop.permute.xlu0 %854
        %v856 = vrot.slane %v855, 4
        %vm857 = vcmask 982016
        %v858 = vsel %vm857, %v856, %v855
        %v860 = vmul.f32 %v853, %v858
        %862 = vst [vmem:[#allocation1] ss:$2 sm:$0xff] %v860
        %v863 = vld.sshfl [vmem:[#allocation1] sm:$0xff pattern:$0x75316420]
        %v864 = vld.sshfl [vmem:[#allocation1 + $0x8] sm:$0xff pattern:$0x75316420]
        %865 = vrot.lane.b32.xlu0 %v863, 72
        %v866 = vpop.permute.xlu0 %865
        %867 = vrot.lane.b32.xlu0 %v864, 72
        %v868 = vpop.permute.xlu0 %867
        %vm869 = vcmask 588800
        %v870 = vsel %vm869, %v866, %v868
        %872 = vst.msk [vmem:[#allocation3 + $0x18] sm:$0xf] %vm575, %v870
        %v873 = vld [vmem:[#allocation2 + $0x4] sm:$0xff]
        %874 = vrot.lane.b32.xlu0 %v371, 126
        %v875 = vpop.permute.xlu0 %874
        %v876 = vrot.slane %v875, 4
        %vm877 = vcmask 1031168
        %v878 = vsel %vm877, %v876, %v875
        %v880 = vmul.f32 %v873, %v878
        %s882 = scalar_lea.vmem [#allocation1], 1
        %883 = vst [vmem:[%s882] ss:$2 sm:$0xff] %v880
        %v884 = vld.sshfl [vmem:[#allocation1] sm:$0xff pattern:$0x75316420]
        %v885 = vld.sshfl [vmem:[#allocation1 + $0x8] sm:$0xff pattern:$0x75316420]
        %886 = vrot.lane.b32.xlu0 %v884, 66
        %v887 = vpop.permute.xlu0 %886
        %888 = vrot.lane.b32.xlu0 %v885, 66
        %v889 = vpop.permute.xlu0 %888
        %vm890 = vcmask 539648
        %v891 = vsel %vm890, %v887, %v889
        %893 = vst.msk [vmem:[#allocation3 + $0x18] sm:$0xf0] %vm590, %v891
        %v894 = vld [vmem:[#allocation2 + $0x4] sm:$0xff]
        %896 = vst [vmem:[#allocation1] ss:$2 sm:$0xff] %v894
        %v897 = vld.sshfl [vmem:[#allocation1] sm:$0xff pattern:$0x75316420]
        %v898 = vld.sshfl [vmem:[#allocation1 + $0x8] sm:$0xff pattern:$0x75316420]
        %899 = vrot.lane.b32.xlu0 %v897, 65
        %v900 = vpop.permute.xlu0 %899
        %901 = vrot.lane.b32.xlu0 %v898, 65
        %v902 = vpop.permute.xlu0 %901
        %vm903 = vcmask 531456
        %v904 = vsel %vm903, %v900, %v902
        %906 = vst.msk [vmem:[#allocation3 + $0x28] sm:$0xf] %vm575, %v904
        %v907 = vld [vmem:[#allocation2 + $0x8] sm:$0xf]
        %v908 = vmul.f32 %v907, %v373
        %s910 = scalar_lea.vmem [#allocation1], 1
        %911 = vst [vmem:[%s910] ss:$2 sm:$0xff] %v908
        %v912 = vld.sshfl [vmem:[#allocation1] sm:$0xff pattern:$0x75316420]
        %913 = vrot.lane.b32.xlu0 %v912, 64
        %v914 = vpop.permute.xlu0 %913
        %916 = vst.msk [vmem:[#allocation3 + $0x28] sm:$0xf0] %vm590, %v914
        %v917 = vld [vmem:[#allocation2 + $0x8] sm:$0xf]
        %918 = vrot.lane.b32.xlu0 %v371, 6
        %v919 = vpop.permute.xlu0 %918
        %v921 = vmul.f32 %v917, %v919
        %923 = vst [vmem:[#allocation1] ss:$2 sm:$0xff] %v921
        %v924 = vld.sshfl [vmem:[#allocation1] sm:$0xff pattern:$0x75316420]
        %925 = vrot.lane.b32.xlu0 %v924, 58
        %v926 = vpop.permute.xlu0 %925
        %928 = vst.msk [vmem:[#allocation3 + $0x38] sm:$0xf] %vm575, %v926
        %v929 = vld [vmem:[#allocation2 + $0x8] sm:$0xf]
        %s931 = scalar_lea.vmem [#allocation1], 1
        %932 = vst [vmem:[%s931] ss:$2 sm:$0xff] %v929
        %v933 = vld.sshfl [vmem:[#allocation1] sm:$0xff pattern:$0x75316420]
        %934 = vrot.lane.b32.xlu0 %v933, 57
        %v935 = vpop.permute.xlu0 %934
        %937 = vst.msk [vmem:[#allocation3 + $0x38] sm:$0xf0] %vm590, %v935
        %v938 = vld [vmem:[#allocation2 + $0x8] sm:$0xf]
        %939 = vrot.lane.b32.xlu0 %v373, 8
        %v940 = vpop.permute.xlu0 %939
        %v942 = vmul.f32 %v938, %v940
        %944 = vst [vmem:[#allocation1] ss:$2 sm:$0xff] %v942
        %v945 = vld.sshfl [vmem:[#allocation1] sm:$0xff pattern:$0x75316420]
        %946 = vrot.lane.b32.xlu0 %v945, 56
        %v947 = vpop.permute.xlu0 %946
        %949 = vst.msk [vmem:[#allocation3 + $0x48] sm:$0xf] %vm575, %v947
        %v950 = vld [vmem:[#allocation3] sm:$0xff]
        %v951 = vld [vmem:[#allocation3 + $0x8] sm:$0xff]
        %v952 = vld [vmem:[#allocation3 + $0x10] sm:$0xff]
        %v953 = vld [vmem:[#allocation3 + $0x18] sm:$0xff]
        %v954 = vld [vmem:[#allocation3 + $0x20] sm:$0xff]
        %v955 = vld [vmem:[#allocation3 + $0x28] sm:$0xff]
        %v956 = vld [vmem:[#allocation3 + $0x30] sm:$0xff]
        %v957 = vld [vmem:[#allocation3 + $0x38] sm:$0xff]
        %v958 = vld [vmem:[#allocation3 + $0x40] sm:$0xf]
        %v959 = vld [vmem:[#allocation3 + $0x48] sm:$0xf]
        %961 = vset.pattern.permute.xlu0 0
        %962 = vperm.xlu0 %961, %v365
        %v963 = vpop.permute.xlu0 %962
        %vm965 = vcmask 293888
        %v967 = vsel %vm965, %v364, 0
        %vm969 = vcmask 1043456
        %v971 = vsel %vm969, %v958, 0
        %v974 = vsel %vm969, %v959, 0
        %976 = vmatpush.msra.mxu0 0.0
        %977 = vmatpush.msra.mxu0 0.0
        %978 = vmatpush.msra.mxu0 0.0
        %979 = vmatpush.msra.mxu0 0.0
        %980 = vmatpush.msra.mxu0 0.0
        %981 = vmatpush.msra.mxu0 0.0
        %982 = vmatpush.msra.mxu0 0.0
        %983 = vmatpush.msra.mxu0 0.0
        %984 = vmatpush.msra.mxu0 0.0
        %985 = vmatpush.msra.mxu0 0.0
        %986 = vmatpush.msra.mxu0 0.0
        %987 = vmatpush.msra.mxu0 %v971
        %988 = vmatpush.msra.mxu0 %v956
        %989 = vmatpush.msra.mxu0 %v954
        %990 = vmatpush.msra.mxu0 %v952
        %991 = vmatpush.msra.mxu0 %v950
        %992 = vmatmul.f32.gmra.mxu0 %v967
        %v993 = vpop.f32.mrf.mxu0
        %v994 = vadd.f32 %v963, %v993
        %995 = vdwg.mxu0
        %996 = vmatpush.msra.mxu0 0.0
        %997 = vmatpush.msra.mxu0 0.0
        %998 = vmatpush.msra.mxu0 0.0
        %999 = vmatpush.msra.mxu0 0.0
        %1000 = vmatpush.msra.mxu0 0.0
        %1001 = vmatpush.msra.mxu0 0.0
        %1002 = vmatpush.msra.mxu0 0.0
        %1003 = vmatpush.msra.mxu0 0.0
        %1004 = vmatpush.msra.mxu0 0.0
        %1005 = vmatpush.msra.mxu0 0.0
        %1006 = vmatpush.msra.mxu0 0.0
        %1007 = vmatpush.msra.mxu0 %v974
        %1008 = vmatpush.msra.mxu0 %v957
        %1009 = vmatpush.msra.mxu0 %v955
        %1010 = vmatpush.msra.mxu0 %v953
        %1011 = vmatpush.msra.mxu0 %v951
        %1012 = vmatmul.f32.gmra.mxu0 %v967
        %v1013 = vpop.f32.mrf.mxu0
        %v1014 = vadd.f32 %v963, %v1013
        %1015 = vdwg.mxu0
        %v1016 = vmax.f32 %v994, 0.0
        %v1017 = vmax.f32 %v1014, 0.0
        %1019 = vset.pattern.permute.xlu0 0
        %1020 = vperm.xlu0 %1019, %v368
        %v1021 = vpop.permute.xlu0 %1020
        %1024 = vset.pattern.permute.xlu0 0
        %1025 = vperm.xlu0 %1024, %v369
        %v1026 = vpop.permute.xlu0 %1025
        %vm1028 = vcmask 31744
        %v1030 = vsel %vm1028, %v366, 0
        %v1033 = vsel %vm1028, %v367, 0
        %v1036 = vsel %vm969, %v1016, 0
        %v1039 = vsel %vm969, %v1017, 0
        %1041 = vmatpush.msra.mxu0 0.0
        %1042 = vmatpush.msra.mxu0 0.0
        %1043 = vmatpush.msra.mxu0 0.0
        %1044 = vmatpush.msra.mxu0 0.0
        %1045 = vmatpush.msra.mxu0 0.0
        %1046 = vmatpush.msra.mxu0 0.0
        %1047 = vmatpush.msra.mxu0 0.0
        %1048 = vmatpush.msra.mxu0 0.0
        %1049 = vmatpush.msra.mxu0 0.0
        %1050 = vmatpush.msra.mxu0 0.0
        %1051 = vmatpush.msra.mxu0 0.0
        %1052 = vmatpush.msra.mxu0 0.0
        %1053 = vmatpush.msra.mxu0 0.0
        %1054 = vmatpush.msra.mxu0 0.0
        %1055 = vmatpush.msra.mxu0 0.0
        %1056 = vmatpush.msra.mxu0 %v1036
        %1057 = vmatmul.f32.gmra.mxu0 %v1030
        %v1058 = vpop.f32.mrf.mxu0
        %v1059 = vadd.f32 %v1021, %v1058
        %1060 = vmatmul.f32.gmra.mxu0 %v1033
        %v1061 = vpop.f32.mrf.mxu0
        %v1062 = vadd.f32 %v1026, %v1061
        %1063 = vdwg.mxu0
        %1064 = vmatpush.msra.mxu0 0.0
        %1065 = vmatpush.msra.mxu0 0.0
        %1066 = vmatpush.msra.mxu0 0.0
        %1067 = vmatpush.msra.mxu0 0.0
        %1068 = vmatpush.msra.mxu0 0.0
        %1069 = vmatpush.msra.mxu0 0.0
        %1070 = vmatpush.msra.mxu0 0.0
        %1071 = vmatpush.msra.mxu0 0.0
        %1072 = vmatpush.msra.mxu0 0.0
        %1073 = vmatpush.msra.mxu0 0.0
        %1074 = vmatpush.msra.mxu0 0.0
        %1075 = vmatpush.msra.mxu0 0.0
        %1076 = vmatpush.msra.mxu0 0.0
        %1077 = vmatpush.msra.mxu0 0.0
        %1078 = vmatpush.msra.mxu0 0.0
        %1079 = vmatpush.msra.mxu0 %v1039
        %1080 = vmatmul.f32.gmra.mxu0 %v1030
        %v1081 = vpop.f32.mrf.mxu0
        %v1082 = vadd.f32 %v1021, %v1081
        %1083 = vmatmul.f32.gmra.mxu0 %v1033
        %v1084 = vpop.f32.mrf.mxu0
        %v1085 = vadd.f32 %v1026, %v1084
        %1086 = vdwg.mxu0
        %v1087 = vadd.f32 %v1059, %v374
        %v1088 = vadd.f32 %v1082, %v375
        %v1089 = vadd.f32 %v1062, %v376
        %v1090 = vadd.f32 %v1085, %v377
        %v1091 = vmax.f32 %v1087, 0.0
        %v1092 = vmax.f32 %v1088, 0.0
        %v1093 = vmax.f32 %v1089, 0.0
        %v1094 = vmax.f32 %v1090, 0.0
        %1095 = vst [vmem:[%s343] sm:$0xff] %v1091
        %1096 = vst [vmem:[%s343 + $0x8] sm:$0xff] %v1092
        %1097 = vst [vmem:[%s343 + $0x10] sm:$0xff] %v1093
        %1098 = vst [vmem:[%s343 + $0x18] sm:$0xff] %v1094
        %s1099 = sand.u32 %s216, 1
        %s1100 = sand.u32 %s216, 1
        %s1101 = smul.addr %s1100, 32
        %s1102 = scalar_lea.vmem [#allocation5], %s1101
        // Predicated region
        $region76: #{bottleneck_forward.1} parent=70 // pred_check
          %p1103 = pneg %p226
        $region77: #{bottleneck_forward.1} parent=70 // pred_check_branch
          %1105 = sbr.rel (%p1103) target = $region79
        $region78: #{bottleneck_forward.1} parent=70 // pred_region
          %s1106 = smul.u32 2, %s24
          %s1107 = smul.addr %s23, 8
          %s1108 = sadd.s32 %s1106, %s1107
          %s1109 = smul.addr %s1108, 8
          %s1110 = scalar_lea.vmem %s8, %s1109
          // Predicated region
          $region80: #{bottleneck_forward.1} parent=78 // pred_check
            _
          $region81: #{bottleneck_forward.1} parent=78 // pred_check_branch
            %1112 = sbr.rel (0) target = $region83
          $region82: #{bottleneck_forward.1} parent=78 // pred_region
            // Predicated region
            $region84: #{bottleneck_forward.1} parent=82 // pred_check
              _
            $region85: #{bottleneck_forward.1} parent=82 // pred_check_branch
              %1114 = sbr.rel (0) target = $region87
            $region86: #{bottleneck_forward.1} parent=82 // pred_region
              loop: start=0, step=1, limit=1
              $region88: #{bottleneck_forward.1} parent=86 // loop_pre_header
                _
              $region89: #{bottleneck_forward.1} parent=86 // loop_header
                %s1116 = sphi 0, %s1120
                %p1117 = scmp.ge.s32.totalorder %s1116, 1
                %s1121 = sphi %s1102, %s1102
                %s1122 = sphi %s1110, %s1110
              $region90: #{bottleneck_forward.1} parent=86 // loop_header_branch
                %1119 = sbr.rel (%p1117) target = $region94
              $region91: #{bottleneck_forward.1} parent=86 // loop_body
                %v1123 = vld [vmem:[%s1121] sm:$0xff]
                %1124 = vst [vmem:[%s1122] sm:$0xff] %v1123
                %v1125 = vld [vmem:[%s1121 + $0x8] sm:$0xff]
                %1126 = vst [vmem:[%s1122 + $0x8] sm:$0xff] %v1125
                %v1127 = vld [vmem:[%s1121 + $0x10] sm:$0xff]
                %1128 = vst [vmem:[%s1122 + $0x20] sm:$0xff] %v1127
                %v1129 = vld [vmem:[%s1121 + $0x18] sm:$0xff]
                %1130 = vst [vmem:[%s1122 + $0x28] sm:$0xff] %v1129
              $region92: #{bottleneck_forward.1} parent=86 // loop_footer
                %s1120 = sadd.s32 1, %s1116
              $region93: #{bottleneck_forward.1} parent=86 // loop_footer_branch
                %1115 = sbr.rel target = $region89
              $region94: #{bottleneck_forward.1} parent=86 // loop_exit
                _
            $region87: #{bottleneck_forward.1} parent=82 // pred_fallthru
              _
            // Predicated region
            $region95: #{bottleneck_forward.1} parent=82 // pred_check
              _
            $region96: #{bottleneck_forward.1} parent=82 // pred_check_branch
              %1132 = sbr.rel target = $region98
            $region97: #{bottleneck_forward.1} parent=82 // pred_region
              _
            $region98: #{bottleneck_forward.1} parent=82 // pred_fallthru
              _
          $region83: #{bottleneck_forward.1} parent=78 // pred_fallthru
            _
          %1133 = vnop
        $region79: #{bottleneck_forward.1} parent=70 // pred_fallthru
          _
      $region71: #{bottleneck_forward.1} parent=5 // pred_fallthru
        _
      %p1134 = scmp.le.s32.totalorder 2, %s14
      // Predicated region
      $region99: #{bottleneck_forward.1} parent=5 // pred_check
        %p1135 = pneg %p1134
      $region100: #{bottleneck_forward.1} parent=5 // pred_check_branch
        %1137 = sbr.rel (%p1135) target = $region102
      $region101: #{bottleneck_forward.1} parent=5 // pred_region
        %s1138 = ssub.s32 %s14, 2
        // Predicated region
        $region103: #{bottleneck_forward.1} parent=101 // pred_check
          %p1139 = pneg %p232
        $region104: #{bottleneck_forward.1} parent=101 // pred_check_branch
          %1141 = sbr.rel (%p1139) target = $region106
        $region105: #{bottleneck_forward.1} parent=101 // pred_region
          %s1142 = sand.u32 %s217, 1
          %s1143 = sand.u32 %s217, 1
          %s1144 = smul.addr %s1143, 32
          %s1145 = scalar_lea.vmem [#allocation5], %s1144
        $region106: #{bottleneck_forward.1} parent=101 // pred_fallthru
          _
      $region102: #{bottleneck_forward.1} parent=5 // pred_fallthru
        _
    $region6: #{bottleneck_forward.1} parent=1 // loop_footer
      %s18 = sadd.s32 1, %s14
    $region7: #{bottleneck_forward.1} parent=1 // loop_footer_branch
      %13 = sbr.rel target = $region3
    $region8: #{bottleneck_forward.1} parent=1 // loop_exit
      _

</llo_original>
